<compile_context>
chip_gen: v7x
topology: tpu7x:2x2x1
jax: 0.10.0
libtpu: 0.0.40
codegen_flags: <defaults>
</compile_context>

<pallas_src>
import functools

import jax
import jax.numpy as jnp
from jax import lax
from jax.experimental import pallas as pl
from jax.experimental.pallas import tpu as pltpu


def _flash_attn_kernel(q_ref, k_ref, v_ref, mask_ref, bias_ref, wo_ref,
                       o_ref, m_sc, l_sc, acc_sc, ctx_sc, *, nh, dh):
    """Flash attention over precomputed per-head Q/K/V + deferred WO matmul.

    Grid = (B, num_q_tiles, num_kv_tiles); kv axis innermost ("arbitrary").
    Block views:
      q_ref    (1, NH, tq, DH) bf16    k_ref/v_ref (1, NH, tk, DH) bf16
      mask_ref (1, 1, 1, tk)   f32     bias_ref    (1, NH, tq, tk) bf16
      wo_ref   (H, H) bf16             o_ref (1, tq, H) [resident across kv
                                       tiles; written only at the last kv]
    Scratch (persist across kv tiles for a given (b, qi)):
      m_sc/l_sc (NH, tq, 1) f32, acc_sc (NH, tq, DH) f32, ctx_sc (tq, H) bf16
    """
    ki = pl.program_id(2)
    nk = pl.num_programs(2)

    @pl.when(ki == 0)
    def _init():
        m_sc[...] = jnp.full_like(m_sc, -jnp.inf)
        l_sc[...] = jnp.zeros_like(l_sc)
        acc_sc[...] = jnp.zeros_like(acc_sc)

    mask = mask_ref[0, 0]                                        # [1, tk] f32

    # Static (unrolled) loop over heads; per-head state lives in scratch.
    # Head-major layout => plain leading-axis indexing, no lane-crossing
    # relayout copies inside the hot kv loop.
    for h in range(nh):
        q_h = q_ref[0, h]                                        # [tq, DH] bf16
        k_h = k_ref[0, h]                                        # [tk, DH] bf16
        v_h = v_ref[0, h]                                        # [tk, DH] bf16

        # QK^T without an explicit transpose: contract the DH axes directly.
        s = lax.dot_general(q_h, k_h, (((1,), (1,)), ((), ())),
                            preferred_element_type=jnp.float32)  # [tq, tk] f32
        # bias streamed as bf16 (halves its HBM traffic); math stays f32.
        s = s + bias_ref[0, h].astype(jnp.float32) + mask

        m_prev = m_sc[h]                                         # [tq, 1]
        m_new = jnp.maximum(m_prev, jnp.max(s, axis=-1, keepdims=True))
        alpha = jnp.exp(m_prev - m_new)                          # [tq, 1]
        # TODO(synk): on v6e/v7x a bf16 exp path (cast s - m_new to bf16) about
        # doubles EUP throughput; kept f32 here for v5e fidelity.
        p = jnp.exp(s - m_new)                                   # [tq, tk] f32

        l_sc[h] = alpha * l_sc[h] + jnp.sum(p, axis=-1, keepdims=True)
        pv = jnp.dot(p.astype(jnp.bfloat16), v_h,
                     preferred_element_type=jnp.float32)         # [tq, DH] f32
        acc_sc[h] = alpha * acc_sc[h] + pv
        m_sc[h] = m_new

    @pl.when(ki == nk - 1)
    def _finalize():
        # Normalize each head (approx reciprocal -> EUP slot), write it into a
        # preallocated (tq, H) bf16 scratch (no NH-way concatenate relayout),
        # then ONE full-width WO matmul for this query tile.
        for h in range(nh):
            inv_l = pl.reciprocal(l_sc[h], approx=True)          # [tq, 1]
            ctx_sc[:, h * dh:(h + 1) * dh] = (acc_sc[h] * inv_l).astype(
                ctx_sc.dtype)
        o_ref[0] = jnp.dot(ctx_sc[...], wo_ref[...],
                           preferred_element_type=jnp.float32).astype(o_ref.dtype)


def prepare_params(params, num_heads, dtype=jnp.bfloat16):
    """One-time weight preprocessing (hoisted out of the forward pass).

    * Fuses wq|wk|wv into one [H, 3H] matrix for a single XLA QKV matmul.
    * Folds the 1/sqrt(DH) attention scale into wq (no per-tile scale pass).
    * Casts to bf16 (MXU operand dtype).
    """
    H = params["wq"].shape[0]
    dh = H // num_heads
    scale = 1.0 / float(dh) ** 0.5
    wqkv = jnp.concatenate(
        [params["wq"] * scale, params["wk"], params["wv"]], axis=1).astype(dtype)
    wo = params["wo"].astype(dtype)
    return {"wqkv": wqkv, "wo": wo}


def _device_tiling():
    """Generation-specific tile sizes and scoped-VMEM limit.

    v5e/v6e (128 MiB VMEM, lower HBM BW): 512-class tiles, ~96 MiB limit.
    v7x (64 MiB VMEM): 256-class tiles, 48 MiB limit.
    """
    try:
        vmem_bytes = pltpu.get_tpu_info().vmem_capacity_bytes
    except Exception:
        vmem_bytes = 64 * 1024 * 1024
    if vmem_bytes >= 96 * 1024 * 1024:
        return 512, 512, 96 * 1024 * 1024
    return 256, 256, 48 * 1024 * 1024


def _weight_spec(shape):
    """Constant-index weight block: single-buffer it when supported.

    The wo index_map never changes across the grid, so default 2-deep
    pipelining only wastes VMEM (matters most on v7x's 64 MiB).
    """
    index_map = lambda b, qi, ki: (0, 0)
    try:
        return pl.BlockSpec(shape, index_map, pipeline_mode=pl.Buffered(1))
    except Exception:  # older jax without pipeline_mode / Buffered(1)
        return pl.BlockSpec(shape, index_map)


def _attention_module(hidden_states, attention_mask, position_bias, params,
                      tq=None, tk=None, out_dtype=jnp.float32):
    """The synthesized wrapped `module`: multi-head self-attention.

    One-shot XLA QKV projection (computed exactly once, never recomputed per
    kv tile) + Pallas flash attention with deferred in-kernel WO projection.
    """
    B, S, H = hidden_states.shape
    NH = position_bias.shape[1]
    assert H % NH == 0, "hidden dim must divide evenly into heads"
    DH = H // NH

    d_tq, d_tk, vmem_limit = _device_tiling()
    tq = min(S, d_tq) if tq is None else tq
    tk = min(S, d_tk) if tk is None else tk
    assert S % tq == 0 and S % tk == 0, "sequence must divide into tiles"
    # Production note: keep H a multiple of 128 so output stores are lane-dense
    # and B * (S // tq) >= 2 so both v7x TensorCores get work.

    # ---- One-shot fused QKV projection (outside the kernel). ----
    x = hidden_states.astype(jnp.bfloat16)
    qkv = jnp.dot(x, params["wqkv"],
                  preferred_element_type=jnp.float32).astype(jnp.bfloat16)
    q, k, v = qkv[..., :H], qkv[..., H:2 * H], qkv[..., 2 * H:]

    def to_heads(t):  # [B, S, H] -> [B, NH, S, DH] (head-major for the kernel)
        return t.reshape(B, S, NH, DH).transpose(0, 2, 1, 3)

    q_h, k_h, v_h = to_heads(q), to_heads(k), to_heads(v)

    mask_f32 = attention_mask.astype(jnp.float32)
    bias_bf16 = position_bias.astype(jnp.bfloat16)  # dominant HBM stream: bf16

    kernel = functools.partial(_flash_attn_kernel, nh=NH, dh=DH)
    grid = (B, S // tq, S // tk)

    out = pl.pallas_call(
        kernel,
        out_shape=jax.ShapeDtypeStruct((B, S, H), out_dtype),
        grid_spec=pltpu.PrefetchScalarGridSpec(
            num_scalar_prefetch=0,
            grid=grid,
            in_specs=[
                pl.BlockSpec((1, NH, tq, DH), lambda b, qi, ki: (b, 0, qi, 0)),
                pl.BlockSpec((1, NH, tk, DH), lambda b, qi, ki: (b, 0, ki, 0)),
                pl.BlockSpec((1, NH, tk, DH), lambda b, qi, ki: (b, 0, ki, 0)),
                pl.BlockSpec((1, 1, 1, tk), lambda b, qi, ki: (b, 0, 0, ki)),
                pl.BlockSpec((1, NH, tq, tk), lambda b, qi, ki: (b, 0, qi, ki)),
                _weight_spec((H, H)),                                    # wo
            ],
            out_specs=pl.BlockSpec((1, tq, H), lambda b, qi, ki: (b, qi, 0)),
            scratch_shapes=[
                pltpu.VMEM((NH, tq, 1), jnp.float32),     # running max m
                pltpu.VMEM((NH, tq, 1), jnp.float32),     # running sum l
                pltpu.VMEM((NH, tq, DH), jnp.float32),    # running context acc
                pltpu.VMEM((tq, H), jnp.bfloat16),        # assembled context
            ],
        ),
        compiler_params=pltpu.CompilerParams(
            dimension_semantics=("parallel", "parallel", "arbitrary"),
            vmem_limit_bytes=vmem_limit,
        ),
    )(q_h, k_h, v_h, mask_f32, bias_bf16, params["wo"])
    return out


def checkpoint_wrapper_forward(hidden_states, attention_mask, position_bias,
                               params, use_checkpoint=False, training=False):
    """JAX equivalent of CheckpointWrapper.forward.

    Forward math is identical with or without checkpointing; jax.checkpoint
    plays the role of torch.utils.checkpoint.checkpoint.
    """
    # TODO(synk): the None->empty-tensor shim of the PyTorch wrapper has no
    # Pallas/JAX equivalent (JAX pytrees handle None natively); omitted.
    fwd = functools.partial(_attention_module, params=params)
    if use_checkpoint and training:
        fwd = jax.checkpoint(fwd)
    attn_out = fwd(hidden_states, attention_mask, position_bias)
    return (attn_out, position_bias)


def _reference(hidden_states, attention_mask, position_bias, params):
    """Pure-jnp f32 reference for correctness checking."""
    B, S, H = hidden_states.shape
    NH = position_bias.shape[1]
    DH = H // NH
    q = (hidden_states @ params["wq"]).reshape(B, S, NH, DH).transpose(0, 2, 1, 3)
    k = (hidden_states @ params["wk"]).reshape(B, S, NH, DH).transpose(0, 2, 1, 3)
    v = (hidden_states @ params["wv"]).reshape(B, S, NH, DH).transpose(0, 2, 1, 3)
    scores = jnp.einsum("bhqd,bhkd->bhqk", q, k) / jnp.sqrt(DH)
    scores = scores + position_bias + attention_mask  # mask broadcasts [B,1,1,S]
    p = jax.nn.softmax(scores, axis=-1)
    ctx = jnp.einsum("bhqk,bhkd->bhqd", p, v)
    ctx = ctx.transpose(0, 2, 1, 3).reshape(B, S, H)
    return ctx @ params["wo"]


if __name__ == "__main__":
    B, S, H, NH = 2, 8, 32, 4

    key = jax.random.PRNGKey(0)
    k_x, k_b, k_q, k_k, k_v, k_o = jax.random.split(key, 6)

    hidden_states = jax.random.normal(k_x, (B, S, H), dtype=jnp.float32)
    # additive attention mask: mask out the last 2 key positions of batch 1
    keep = jnp.ones((B, S), dtype=jnp.float32).at[1, -2:].set(0.0)
    attention_mask = ((1.0 - keep) * -1e9).reshape(B, 1, 1, S)
    position_bias = 0.1 * jax.random.normal(k_b, (B, NH, S, S), dtype=jnp.float32)

    params = {
        "wq": 0.02 * jax.random.normal(k_q, (H, H), dtype=jnp.float32),
        "wk": 0.02 * jax.random.normal(k_k, (H, H), dtype=jnp.float32),
        "wv": 0.02 * jax.random.normal(k_v, (H, H), dtype=jnp.float32),
        "wo": 0.02 * jax.random.normal(k_o, (H, H), dtype=jnp.float32),
    }
    prepared = prepare_params(params, num_heads=NH)  # one-time layout/bf16 cast

    out, pos_bias_out = checkpoint_wrapper_forward(
        hidden_states, attention_mask, position_bias, prepared,
        use_checkpoint=False, training=False)
    out = jax.block_until_ready(out)

    ref = _reference(hidden_states, attention_mask, position_bias, params)
    assert out.shape == (B, S, H)
    # bf16 MXU operands / bf16 bias stream with f32 accumulation -> bf16 tol.
    assert jnp.allclose(out, ref, atol=2e-3, rtol=2e-2), "mismatch vs reference"
    assert pos_bias_out.shape == position_bias.shape

    print("KERNEL_OK")
</pallas_src>

<mosaic_0001>
module attributes {stable_mosaic.version = 11 : i64} {
  func.func @_flash_attn_kernel(%arg0: i32, %arg1: i32, %arg2: i32, %arg3: memref<1x4x8x8xbf16, #tpu.memory_space<vmem>>, %arg4: memref<1x4x8x8xbf16, #tpu.memory_space<vmem>>, %arg5: memref<1x4x8x8xbf16, #tpu.memory_space<vmem>>, %arg6: memref<1x1x1x8xf32, #tpu.memory_space<vmem>>, %arg7: memref<1x4x8x8xbf16, #tpu.memory_space<vmem>>, %arg8: memref<32x32xbf16, #tpu.memory_space<vmem>>, %arg9: memref<1x8x32xf32, #tpu.memory_space<vmem>>, %arg10: memref<4x8x1xf32, #tpu.memory_space<vmem>>, %arg11: memref<4x8x1xf32, #tpu.memory_space<vmem>>, %arg12: memref<4x8x8xf32, #tpu.memory_space<vmem>>, %arg13: memref<8x32xbf16, #tpu.memory_space<vmem>>) attributes {dimension_semantics = [#tpu.dimension_semantics<parallel>, #tpu.dimension_semantics<parallel>, #tpu.dimension_semantics<arbitrary>], iteration_bounds = array<i64: 2, 1, 1>, scalar_prefetch = 0 : i64, scratch_operands = 4 : i64, tpu.core_type = #tpu.core_type<tc>, window_params = [{transform_indices = @transform_0, window_bounds = array<i64: 1, 4, 8, 8>}, {transform_indices = @transform_1, window_bounds = array<i64: 1, 4, 8, 8>}, {transform_indices = @transform_2, window_bounds = array<i64: 1, 4, 8, 8>}, {transform_indices = @transform_3, window_bounds = array<i64: 1, 1, 1, 8>}, {transform_indices = @transform_4, window_bounds = array<i64: 1, 4, 8, 8>}, {pipeline_mode = #tpu.pipeline_mode<synchronous>, transform_indices = @transform_5, window_bounds = array<i64: 32, 32>}, {transform_indices = @transform_6, window_bounds = array<i64: 1, 8, 32>}]} {
    %c0_i32 = arith.constant 0 : i32
    %0 = arith.cmpi eq, %arg2, %c0_i32 : i32
    %1 = arith.extui %0 : i1 to i32
    %c0_i32_0 = arith.constant 0 : i32
    %2 = arith.cmpi ne, %1, %c0_i32_0 : i32
    scf.if %2 {
      %cst_154 = arith.constant 0xFF800000 : f32
      %188 = vector.broadcast %cst_154 : f32 to vector<4x8x1xf32>
      %c0_155 = arith.constant 0 : index
      %c0_156 = arith.constant 0 : index
      %c0_157 = arith.constant 0 : index
      %189 = vector.load %arg10[%c0_155, %c0_156, %c0_157] : memref<4x8x1xf32, #tpu.memory_space<vmem>>, vector<4x8x1xf32>
      tpu.vector_store %arg10[%c0_155, %c0_156, %c0_157], %188 {strides = array<i32>} : memref<4x8x1xf32, #tpu.memory_space<vmem>>, vector<4x8x1xf32>,
      %cst_158 = arith.constant 0.000000e+00 : f32
      %190 = vector.broadcast %cst_158 : f32 to vector<4x8x1xf32>
      %c0_159 = arith.constant 0 : index
      %c0_160 = arith.constant 0 : index
      %c0_161 = arith.constant 0 : index
      %191 = vector.load %arg11[%c0_159, %c0_160, %c0_161] : memref<4x8x1xf32, #tpu.memory_space<vmem>>, vector<4x8x1xf32>
      tpu.vector_store %arg11[%c0_159, %c0_160, %c0_161], %190 {strides = array<i32>} : memref<4x8x1xf32, #tpu.memory_space<vmem>>, vector<4x8x1xf32>,
      %cst_162 = arith.constant 0.000000e+00 : f32
      %192 = vector.broadcast %cst_162 : f32 to vector<4x8x8xf32>
      %c0_163 = arith.constant 0 : index
      %c0_164 = arith.constant 0 : index
      %c0_165 = arith.constant 0 : index
      %193 = vector.load %arg12[%c0_163, %c0_164, %c0_165] : memref<4x8x8xf32, #tpu.memory_space<vmem>>, vector<4x8x8xf32>
      tpu.vector_store %arg12[%c0_163, %c0_164, %c0_165], %192 {strides = array<i32>} : memref<4x8x8xf32, #tpu.memory_space<vmem>>, vector<4x8x8xf32>,
    } else {
    }
    %c0 = arith.constant 0 : index
    %c0_1 = arith.constant 0 : index
    %c0_2 = arith.constant 0 : index
    %c0_3 = arith.constant 0 : index
    %3 = vector.load %arg6[%c0, %c0_1, %c0_2, %c0_3] : memref<1x1x1x8xf32, #tpu.memory_space<vmem>>, vector<1x1x1x8xf32>
    %4 = vector.shape_cast %3 : vector<1x1x1x8xf32> to vector<1x8xf32>
    %c0_4 = arith.constant 0 : index
    %c0_5 = arith.constant 0 : index
    %c0_6 = arith.constant 0 : index
    %c0_7 = arith.constant 0 : index
    %5 = vector.load %arg3[%c0_4, %c0_5, %c0_6, %c0_7] : memref<1x4x8x8xbf16, #tpu.memory_space<vmem>>, vector<1x1x8x8xbf16>
    %6 = vector.shape_cast %5 : vector<1x1x8x8xbf16> to vector<8x8xbf16>
    %c0_8 = arith.constant 0 : index
    %c0_9 = arith.constant 0 : index
    %c0_10 = arith.constant 0 : index
    %c0_11 = arith.constant 0 : index
    %7 = vector.load %arg4[%c0_8, %c0_9, %c0_10, %c0_11] : memref<1x4x8x8xbf16, #tpu.memory_space<vmem>>, vector<1x1x8x8xbf16>
    %8 = vector.shape_cast %7 : vector<1x1x8x8xbf16> to vector<8x8xbf16>
    %c0_12 = arith.constant 0 : index
    %c0_13 = arith.constant 0 : index
    %c0_14 = arith.constant 0 : index
    %c0_15 = arith.constant 0 : index
    %9 = vector.load %arg5[%c0_12, %c0_13, %c0_14, %c0_15] : memref<1x4x8x8xbf16, #tpu.memory_space<vmem>>, vector<1x1x8x8xbf16>
    %10 = vector.shape_cast %9 : vector<1x1x8x8xbf16> to vector<8x8xbf16>
    %cst = arith.constant dense<0.000000e+00> : vector<8x8xf32>
    %11 = tpu.matmul %6, %8, %cst {dimension_numbers = #tpu.dot_dimension_numbers<[1], [1], [0], [0], [0, 0, 1, 0], [], []>} : vector<8x8xbf16>, vector<8x8xbf16>, vector<8x8xf32> -> vector<8x8xf32>
    %c0_16 = arith.constant 0 : index
    %c0_17 = arith.constant 0 : index
    %c0_18 = arith.constant 0 : index
    %c0_19 = arith.constant 0 : index
    %12 = vector.load %arg7[%c0_16, %c0_17, %c0_18, %c0_19] : memref<1x4x8x8xbf16, #tpu.memory_space<vmem>>, vector<1x1x8x8xbf16>
    %13 = vector.shape_cast %12 : vector<1x1x8x8xbf16> to vector<8x8xbf16>
    %14 = arith.extf %13 : vector<8x8xbf16> to vector<8x8xf32>
    %15 = arith.addf %11, %14 : vector<8x8xf32>
    %16 = vector.broadcast %4 : vector<1x8xf32> to vector<8x8xf32>
    %17 = arith.addf %15, %16 : vector<8x8xf32>
    %c0_20 = arith.constant 0 : index
    %c0_21 = arith.constant 0 : index
    %c0_22 = arith.constant 0 : index
    %18 = vector.load %arg10[%c0_20, %c0_21, %c0_22] : memref<4x8x1xf32, #tpu.memory_space<vmem>>, vector<1x8x1xf32>
    %19 = vector.shape_cast %18 : vector<1x8x1xf32> to vector<8x1xf32>
    %cst_23 = arith.constant dense<0xFF800000> : vector<8xf32>
    %20 = vector.multi_reduction <maximumf>, %17, %cst_23 [1] : vector<8x8xf32> to vector<8xf32>
    %21 = vector.shape_cast %20 : vector<8xf32> to vector<8x1xf32>
    %22 = arith.maximumf %19, %21 : vector<8x1xf32>
    %23 = arith.subf %19, %22 : vector<8x1xf32>
    %24 = math.exp %23 : vector<8x1xf32>
    %25 = vector.broadcast %22 : vector<8x1xf32> to vector<8x8xf32>
    %26 = arith.subf %17, %25 : vector<8x8xf32>
    %27 = math.exp %26 : vector<8x8xf32>
    %c0_24 = arith.constant 0 : index
    %c0_25 = arith.constant 0 : index
    %c0_26 = arith.constant 0 : index
    %28 = vector.load %arg11[%c0_24, %c0_25, %c0_26] : memref<4x8x1xf32, #tpu.memory_space<vmem>>, vector<1x8x1xf32>
    %29 = vector.shape_cast %28 : vector<1x8x1xf32> to vector<8x1xf32>
    %30 = arith.mulf %24, %29 : vector<8x1xf32>
    %cst_27 = arith.constant dense<0.000000e+00> : vector<8xf32>
    %31 = vector.multi_reduction <add>, %27, %cst_27 [1] : vector<8x8xf32> to vector<8xf32>
    %32 = vector.shape_cast %31 : vector<8xf32> to vector<8x1xf32>
    %33 = arith.addf %30, %32 : vector<8x1xf32>
    %c0_28 = arith.constant 0 : index
    %c0_29 = arith.constant 0 : index
    %c0_30 = arith.constant 0 : index
    %34 = vector.load %arg11[%c0_28, %c0_29, %c0_30] : memref<4x8x1xf32, #tpu.memory_space<vmem>>, vector<1x8x1xf32>
    %35 = vector.shape_cast %34 : vector<1x8x1xf32> to vector<8x1xf32>
    %36 = vector.shape_cast %33 : vector<8x1xf32> to vector<1x8x1xf32>
    tpu.vector_store %arg11[%c0_28, %c0_29, %c0_30], %36 {strides = array<i32>} : memref<4x8x1xf32, #tpu.memory_space<vmem>>, vector<1x8x1xf32>,
    %37 = arith.truncf %27 : vector<8x8xf32> to vector<8x8xbf16>
    %cst_31 = arith.constant dense<0.000000e+00> : vector<8x8xf32>
    %38 = tpu.matmul %37, %10, %cst_31 {dimension_numbers = #tpu.dot_dimension_numbers<[1], [0], [0], [1], [0, 0, 1, 1], [], []>} : vector<8x8xbf16>, vector<8x8xbf16>, vector<8x8xf32> -> vector<8x8xf32>
    %c0_32 = arith.constant 0 : index
    %c0_33 = arith.constant 0 : index
    %c0_34 = arith.constant 0 : index
    %39 = vector.load %arg12[%c0_32, %c0_33, %c0_34] : memref<4x8x8xf32, #tpu.memory_space<vmem>>, vector<1x8x8xf32>
    %40 = vector.shape_cast %39 : vector<1x8x8xf32> to vector<8x8xf32>
    %41 = vector.broadcast %24 : vector<8x1xf32> to vector<8x8xf32>
    %42 = arith.mulf %41, %40 : vector<8x8xf32>
    %43 = arith.addf %42, %38 : vector<8x8xf32>
    %c0_35 = arith.constant 0 : index
    %c0_36 = arith.constant 0 : index
    %c0_37 = arith.constant 0 : index
    %44 = vector.load %arg12[%c0_35, %c0_36, %c0_37] : memref<4x8x8xf32, #tpu.memory_space<vmem>>, vector<1x8x8xf32>
    %45 = vector.shape_cast %44 : vector<1x8x8xf32> to vector<8x8xf32>
    %46 = vector.shape_cast %43 : vector<8x8xf32> to vector<1x8x8xf32>
    tpu.vector_store %arg12[%c0_35, %c0_36, %c0_37], %46 {strides = array<i32>} : memref<4x8x8xf32, #tpu.memory_space<vmem>>, vector<1x8x8xf32>,
    %c0_38 = arith.constant 0 : index
    %c0_39 = arith.constant 0 : index
    %c0_40 = arith.constant 0 : index
    %47 = vector.load %arg10[%c0_38, %c0_39, %c0_40] : memref<4x8x1xf32, #tpu.memory_space<vmem>>, vector<1x8x1xf32>
    %48 = vector.shape_cast %47 : vector<1x8x1xf32> to vector<8x1xf32>
    %49 = vector.shape_cast %22 : vector<8x1xf32> to vector<1x8x1xf32>
    tpu.vector_store %arg10[%c0_38, %c0_39, %c0_40], %49 {strides = array<i32>} : memref<4x8x1xf32, #tpu.memory_space<vmem>>, vector<1x8x1xf32>,
    %c0_41 = arith.constant 0 : index
    %c1 = arith.constant 1 : index
    %c0_42 = arith.constant 0 : index
    %c0_43 = arith.constant 0 : index
    %50 = vector.load %arg3[%c0_41, %c1, %c0_42, %c0_43] : memref<1x4x8x8xbf16, #tpu.memory_space<vmem>>, vector<1x1x8x8xbf16>
    %51 = vector.shape_cast %50 : vector<1x1x8x8xbf16> to vector<8x8xbf16>
    %c0_44 = arith.constant 0 : index
    %c1_45 = arith.constant 1 : index
    %c0_46 = arith.constant 0 : index
    %c0_47 = arith.constant 0 : index
    %52 = vector.load %arg4[%c0_44, %c1_45, %c0_46, %c0_47] : memref<1x4x8x8xbf16, #tpu.memory_space<vmem>>, vector<1x1x8x8xbf16>
    %53 = vector.shape_cast %52 : vector<1x1x8x8xbf16> to vector<8x8xbf16>
    %c0_48 = arith.constant 0 : index
    %c1_49 = arith.constant 1 : index
    %c0_50 = arith.constant 0 : index
    %c0_51 = arith.constant 0 : index
    %54 = vector.load %arg5[%c0_48, %c1_49, %c0_50, %c0_51] : memref<1x4x8x8xbf16, #tpu.memory_space<vmem>>, vector<1x1x8x8xbf16>
    %55 = vector.shape_cast %54 : vector<1x1x8x8xbf16> to vector<8x8xbf16>
    %cst_52 = arith.constant dense<0.000000e+00> : vector<8x8xf32>
    %56 = tpu.matmul %51, %53, %cst_52 {dimension_numbers = #tpu.dot_dimension_numbers<[1], [1], [0], [0], [0, 0, 1, 0], [], []>} : vector<8x8xbf16>, vector<8x8xbf16>, vector<8x8xf32> -> vector<8x8xf32>
    %c0_53 = arith.constant 0 : index
    %c1_54 = arith.constant 1 : index
    %c0_55 = arith.constant 0 : index
    %c0_56 = arith.constant 0 : index
    %57 = vector.load %arg7[%c0_53, %c1_54, %c0_55, %c0_56] : memref<1x4x8x8xbf16, #tpu.memory_space<vmem>>, vector<1x1x8x8xbf16>
    %58 = vector.shape_cast %57 : vector<1x1x8x8xbf16> to vector<8x8xbf16>
    %59 = arith.extf %58 : vector<8x8xbf16> to vector<8x8xf32>
    %60 = arith.addf %56, %59 : vector<8x8xf32>
    %61 = vector.broadcast %4 : vector<1x8xf32> to vector<8x8xf32>
    %62 = arith.addf %60, %61 : vector<8x8xf32>
    %c1_57 = arith.constant 1 : index
    %c0_58 = arith.constant 0 : index
    %c0_59 = arith.constant 0 : index
    %63 = vector.load %arg10[%c1_57, %c0_58, %c0_59] : memref<4x8x1xf32, #tpu.memory_space<vmem>>, vector<1x8x1xf32>
    %64 = vector.shape_cast %63 : vector<1x8x1xf32> to vector<8x1xf32>
    %cst_60 = arith.constant dense<0xFF800000> : vector<8xf32>
    %65 = vector.multi_reduction <maximumf>, %62, %cst_60 [1] : vector<8x8xf32> to vector<8xf32>
    %66 = vector.shape_cast %65 : vector<8xf32> to vector<8x1xf32>
    %67 = arith.maximumf %64, %66 : vector<8x1xf32>
    %68 = arith.subf %64, %67 : vector<8x1xf32>
    %69 = math.exp %68 : vector<8x1xf32>
    %70 = vector.broadcast %67 : vector<8x1xf32> to vector<8x8xf32>
    %71 = arith.subf %62, %70 : vector<8x8xf32>
    %72 = math.exp %71 : vector<8x8xf32>
    %c1_61 = arith.constant 1 : index
    %c0_62 = arith.constant 0 : index
    %c0_63 = arith.constant 0 : index
    %73 = vector.load %arg11[%c1_61, %c0_62, %c0_63] : memref<4x8x1xf32, #tpu.memory_space<vmem>>, vector<1x8x1xf32>
    %74 = vector.shape_cast %73 : vector<1x8x1xf32> to vector<8x1xf32>
    %75 = arith.mulf %69, %74 : vector<8x1xf32>
    %cst_64 = arith.constant dense<0.000000e+00> : vector<8xf32>
    %76 = vector.multi_reduction <add>, %72, %cst_64 [1] : vector<8x8xf32> to vector<8xf32>
    %77 = vector.shape_cast %76 : vector<8xf32> to vector<8x1xf32>
    %78 = arith.addf %75, %77 : vector<8x1xf32>
    %c1_65 = arith.constant 1 : index
    %c0_66 = arith.constant 0 : index
    %c0_67 = arith.constant 0 : index
    %79 = vector.load %arg11[%c1_65, %c0_66, %c0_67] : memref<4x8x1xf32, #tpu.memory_space<vmem>>, vector<1x8x1xf32>
    %80 = vector.shape_cast %79 : vector<1x8x1xf32> to vector<8x1xf32>
    %81 = vector.shape_cast %78 : vector<8x1xf32> to vector<1x8x1xf32>
    tpu.vector_store %arg11[%c1_65, %c0_66, %c0_67], %81 {strides = array<i32>} : memref<4x8x1xf32, #tpu.memory_space<vmem>>, vector<1x8x1xf32>,
    %82 = arith.truncf %72 : vector<8x8xf32> to vector<8x8xbf16>
    %cst_68 = arith.constant dense<0.000000e+00> : vector<8x8xf32>
    %83 = tpu.matmul %82, %55, %cst_68 {dimension_numbers = #tpu.dot_dimension_numbers<[1], [0], [0], [1], [0, 0, 1, 1], [], []>} : vector<8x8xbf16>, vector<8x8xbf16>, vector<8x8xf32> -> vector<8x8xf32>
    %c1_69 = arith.constant 1 : index
    %c0_70 = arith.constant 0 : index
    %c0_71 = arith.constant 0 : index
    %84 = vector.load %arg12[%c1_69, %c0_70, %c0_71] : memref<4x8x8xf32, #tpu.memory_space<vmem>>, vector<1x8x8xf32>
    %85 = vector.shape_cast %84 : vector<1x8x8xf32> to vector<8x8xf32>
    %86 = vector.broadcast %69 : vector<8x1xf32> to vector<8x8xf32>
    %87 = arith.mulf %86, %85 : vector<8x8xf32>
    %88 = arith.addf %87, %83 : vector<8x8xf32>
    %c1_72 = arith.constant 1 : index
    %c0_73 = arith.constant 0 : index
    %c0_74 = arith.constant 0 : index
    %89 = vector.load %arg12[%c1_72, %c0_73, %c0_74] : memref<4x8x8xf32, #tpu.memory_space<vmem>>, vector<1x8x8xf32>
    %90 = vector.shape_cast %89 : vector<1x8x8xf32> to vector<8x8xf32>
    %91 = vector.shape_cast %88 : vector<8x8xf32> to vector<1x8x8xf32>
    tpu.vector_store %arg12[%c1_72, %c0_73, %c0_74], %91 {strides = array<i32>} : memref<4x8x8xf32, #tpu.memory_space<vmem>>, vector<1x8x8xf32>,
    %c1_75 = arith.constant 1 : index
    %c0_76 = arith.constant 0 : index
    %c0_77 = arith.constant 0 : index
    %92 = vector.load %arg10[%c1_75, %c0_76, %c0_77] : memref<4x8x1xf32, #tpu.memory_space<vmem>>, vector<1x8x1xf32>
    %93 = vector.shape_cast %92 : vector<1x8x1xf32> to vector<8x1xf32>
    %94 = vector.shape_cast %67 : vector<8x1xf32> to vector<1x8x1xf32>
    tpu.vector_store %arg10[%c1_75, %c0_76, %c0_77], %94 {strides = array<i32>} : memref<4x8x1xf32, #tpu.memory_space<vmem>>, vector<1x8x1xf32>,
    %c0_78 = arith.constant 0 : index
    %c2 = arith.constant 2 : index
    %c0_79 = arith.constant 0 : index
    %c0_80 = arith.constant 0 : index
    %95 = vector.load %arg3[%c0_78, %c2, %c0_79, %c0_80] : memref<1x4x8x8xbf16, #tpu.memory_space<vmem>>, vector<1x1x8x8xbf16>
    %96 = vector.shape_cast %95 : vector<1x1x8x8xbf16> to vector<8x8xbf16>
    %c0_81 = arith.constant 0 : index
    %c2_82 = arith.constant 2 : index
    %c0_83 = arith.constant 0 : index
    %c0_84 = arith.constant 0 : index
    %97 = vector.load %arg4[%c0_81, %c2_82, %c0_83, %c0_84] : memref<1x4x8x8xbf16, #tpu.memory_space<vmem>>, vector<1x1x8x8xbf16>
    %98 = vector.shape_cast %97 : vector<1x1x8x8xbf16> to vector<8x8xbf16>
    %c0_85 = arith.constant 0 : index
    %c2_86 = arith.constant 2 : index
    %c0_87 = arith.constant 0 : index
    %c0_88 = arith.constant 0 : index
    %99 = vector.load %arg5[%c0_85, %c2_86, %c0_87, %c0_88] : memref<1x4x8x8xbf16, #tpu.memory_space<vmem>>, vector<1x1x8x8xbf16>
    %100 = vector.shape_cast %99 : vector<1x1x8x8xbf16> to vector<8x8xbf16>
    %cst_89 = arith.constant dense<0.000000e+00> : vector<8x8xf32>
    %101 = tpu.matmul %96, %98, %cst_89 {dimension_numbers = #tpu.dot_dimension_numbers<[1], [1], [0], [0], [0, 0, 1, 0], [], []>} : vector<8x8xbf16>, vector<8x8xbf16>, vector<8x8xf32> -> vector<8x8xf32>
    %c0_90 = arith.constant 0 : index
    %c2_91 = arith.constant 2 : index
    %c0_92 = arith.constant 0 : index
    %c0_93 = arith.constant 0 : index
    %102 = vector.load %arg7[%c0_90, %c2_91, %c0_92, %c0_93] : memref<1x4x8x8xbf16, #tpu.memory_space<vmem>>, vector<1x1x8x8xbf16>
    %103 = vector.shape_cast %102 : vector<1x1x8x8xbf16> to vector<8x8xbf16>
    %104 = arith.extf %103 : vector<8x8xbf16> to vector<8x8xf32>
    %105 = arith.addf %101, %104 : vector<8x8xf32>
    %106 = vector.broadcast %4 : vector<1x8xf32> to vector<8x8xf32>
    %107 = arith.addf %105, %106 : vector<8x8xf32>
    %c2_94 = arith.constant 2 : index
    %c0_95 = arith.constant 0 : index
    %c0_96 = arith.constant 0 : index
    %108 = vector.load %arg10[%c2_94, %c0_95, %c0_96] : memref<4x8x1xf32, #tpu.memory_space<vmem>>, vector<1x8x1xf32>
    %109 = vector.shape_cast %108 : vector<1x8x1xf32> to vector<8x1xf32>
    %cst_97 = arith.constant dense<0xFF800000> : vector<8xf32>
    %110 = vector.multi_reduction <maximumf>, %107, %cst_97 [1] : vector<8x8xf32> to vector<8xf32>
    %111 = vector.shape_cast %110 : vector<8xf32> to vector<8x1xf32>
    %112 = arith.maximumf %109, %111 : vector<8x1xf32>
    %113 = arith.subf %109, %112 : vector<8x1xf32>
    %114 = math.exp %113 : vector<8x1xf32>
    %115 = vector.broadcast %112 : vector<8x1xf32> to vector<8x8xf32>
    %116 = arith.subf %107, %115 : vector<8x8xf32>
    %117 = math.exp %116 : vector<8x8xf32>
    %c2_98 = arith.constant 2 : index
    %c0_99 = arith.constant 0 : index
    %c0_100 = arith.constant 0 : index
    %118 = vector.load %arg11[%c2_98, %c0_99, %c0_100] : memref<4x8x1xf32, #tpu.memory_space<vmem>>, vector<1x8x1xf32>
    %119 = vector.shape_cast %118 : vector<1x8x1xf32> to vector<8x1xf32>
    %120 = arith.mulf %114, %119 : vector<8x1xf32>
    %cst_101 = arith.constant dense<0.000000e+00> : vector<8xf32>
    %121 = vector.multi_reduction <add>, %117, %cst_101 [1] : vector<8x8xf32> to vector<8xf32>
    %122 = vector.shape_cast %121 : vector<8xf32> to vector<8x1xf32>
    %123 = arith.addf %120, %122 : vector<8x1xf32>
    %c2_102 = arith.constant 2 : index
    %c0_103 = arith.constant 0 : index
    %c0_104 = arith.constant 0 : index
    %124 = vector.load %arg11[%c2_102, %c0_103, %c0_104] : memref<4x8x1xf32, #tpu.memory_space<vmem>>, vector<1x8x1xf32>
    %125 = vector.shape_cast %124 : vector<1x8x1xf32> to vector<8x1xf32>
    %126 = vector.shape_cast %123 : vector<8x1xf32> to vector<1x8x1xf32>
    tpu.vector_store %arg11[%c2_102, %c0_103, %c0_104], %126 {strides = array<i32>} : memref<4x8x1xf32, #tpu.memory_space<vmem>>, vector<1x8x1xf32>,
    %127 = arith.truncf %117 : vector<8x8xf32> to vector<8x8xbf16>
    %cst_105 = arith.constant dense<0.000000e+00> : vector<8x8xf32>
    %128 = tpu.matmul %127, %100, %cst_105 {dimension_numbers = #tpu.dot_dimension_numbers<[1], [0], [0], [1], [0, 0, 1, 1], [], []>} : vector<8x8xbf16>, vector<8x8xbf16>, vector<8x8xf32> -> vector<8x8xf32>
    %c2_106 = arith.constant 2 : index
    %c0_107 = arith.constant 0 : index
    %c0_108 = arith.constant 0 : index
    %129 = vector.load %arg12[%c2_106, %c0_107, %c0_108] : memref<4x8x8xf32, #tpu.memory_space<vmem>>, vector<1x8x8xf32>
    %130 = vector.shape_cast %129 : vector<1x8x8xf32> to vector<8x8xf32>
    %131 = vector.broadcast %114 : vector<8x1xf32> to vector<8x8xf32>
    %132 = arith.mulf %131, %130 : vector<8x8xf32>
    %133 = arith.addf %132, %128 : vector<8x8xf32>
    %c2_109 = arith.constant 2 : index
    %c0_110 = arith.constant 0 : index
    %c0_111 = arith.constant 0 : index
    %134 = vector.load %arg12[%c2_109, %c0_110, %c0_111] : memref<4x8x8xf32, #tpu.memory_space<vmem>>, vector<1x8x8xf32>
    %135 = vector.shape_cast %134 : vector<1x8x8xf32> to vector<8x8xf32>
    %136 = vector.shape_cast %133 : vector<8x8xf32> to vector<1x8x8xf32>
    tpu.vector_store %arg12[%c2_109, %c0_110, %c0_111], %136 {strides = array<i32>} : memref<4x8x8xf32, #tpu.memory_space<vmem>>, vector<1x8x8xf32>,
    %c2_112 = arith.constant 2 : index
    %c0_113 = arith.constant 0 : index
    %c0_114 = arith.constant 0 : index
    %137 = vector.load %arg10[%c2_112, %c0_113, %c0_114] : memref<4x8x1xf32, #tpu.memory_space<vmem>>, vector<1x8x1xf32>
    %138 = vector.shape_cast %137 : vector<1x8x1xf32> to vector<8x1xf32>
    %139 = vector.shape_cast %112 : vector<8x1xf32> to vector<1x8x1xf32>
    tpu.vector_store %arg10[%c2_112, %c0_113, %c0_114], %139 {strides = array<i32>} : memref<4x8x1xf32, #tpu.memory_space<vmem>>, vector<1x8x1xf32>,
    %c0_115 = arith.constant 0 : index
    %c3 = arith.constant 3 : index
    %c0_116 = arith.constant 0 : index
    %c0_117 = arith.constant 0 : index
    %140 = vector.load %arg3[%c0_115, %c3, %c0_116, %c0_117] : memref<1x4x8x8xbf16, #tpu.memory_space<vmem>>, vector<1x1x8x8xbf16>
    %141 = vector.shape_cast %140 : vector<1x1x8x8xbf16> to vector<8x8xbf16>
    %c0_118 = arith.constant 0 : index
    %c3_119 = arith.constant 3 : index
    %c0_120 = arith.constant 0 : index
    %c0_121 = arith.constant 0 : index
    %142 = vector.load %arg4[%c0_118, %c3_119, %c0_120, %c0_121] : memref<1x4x8x8xbf16, #tpu.memory_space<vmem>>, vector<1x1x8x8xbf16>
    %143 = vector.shape_cast %142 : vector<1x1x8x8xbf16> to vector<8x8xbf16>
    %c0_122 = arith.constant 0 : index
    %c3_123 = arith.constant 3 : index
    %c0_124 = arith.constant 0 : index
    %c0_125 = arith.constant 0 : index
    %144 = vector.load %arg5[%c0_122, %c3_123, %c0_124, %c0_125] : memref<1x4x8x8xbf16, #tpu.memory_space<vmem>>, vector<1x1x8x8xbf16>
    %145 = vector.shape_cast %144 : vector<1x1x8x8xbf16> to vector<8x8xbf16>
    %cst_126 = arith.constant dense<0.000000e+00> : vector<8x8xf32>
    %146 = tpu.matmul %141, %143, %cst_126 {dimension_numbers = #tpu.dot_dimension_numbers<[1], [1], [0], [0], [0, 0, 1, 0], [], []>} : vector<8x8xbf16>, vector<8x8xbf16>, vector<8x8xf32> -> vector<8x8xf32>
    %c0_127 = arith.constant 0 : index
    %c3_128 = arith.constant 3 : index
    %c0_129 = arith.constant 0 : index
    %c0_130 = arith.constant 0 : index
    %147 = vector.load %arg7[%c0_127, %c3_128, %c0_129, %c0_130] : memref<1x4x8x8xbf16, #tpu.memory_space<vmem>>, vector<1x1x8x8xbf16>
    %148 = vector.shape_cast %147 : vector<1x1x8x8xbf16> to vector<8x8xbf16>
    %149 = arith.extf %148 : vector<8x8xbf16> to vector<8x8xf32>
    %150 = arith.addf %146, %149 : vector<8x8xf32>
    %151 = vector.broadcast %4 : vector<1x8xf32> to vector<8x8xf32>
    %152 = arith.addf %150, %151 : vector<8x8xf32>
    %c3_131 = arith.constant 3 : index
    %c0_132 = arith.constant 0 : index
    %c0_133 = arith.constant 0 : index
    %153 = vector.load %arg10[%c3_131, %c0_132, %c0_133] : memref<4x8x1xf32, #tpu.memory_space<vmem>>, vector<1x8x1xf32>
    %154 = vector.shape_cast %153 : vector<1x8x1xf32> to vector<8x1xf32>
    %cst_134 = arith.constant dense<0xFF800000> : vector<8xf32>
    %155 = vector.multi_reduction <maximumf>, %152, %cst_134 [1] : vector<8x8xf32> to vector<8xf32>
    %156 = vector.shape_cast %155 : vector<8xf32> to vector<8x1xf32>
    %157 = arith.maximumf %154, %156 : vector<8x1xf32>
    %158 = arith.subf %154, %157 : vector<8x1xf32>
    %159 = math.exp %158 : vector<8x1xf32>
    %160 = vector.broadcast %157 : vector<8x1xf32> to vector<8x8xf32>
    %161 = arith.subf %152, %160 : vector<8x8xf32>
    %162 = math.exp %161 : vector<8x8xf32>
    %c3_135 = arith.constant 3 : index
    %c0_136 = arith.constant 0 : index
    %c0_137 = arith.constant 0 : index
    %163 = vector.load %arg11[%c3_135, %c0_136, %c0_137] : memref<4x8x1xf32, #tpu.memory_space<vmem>>, vector<1x8x1xf32>
    %164 = vector.shape_cast %163 : vector<1x8x1xf32> to vector<8x1xf32>
    %165 = arith.mulf %159, %164 : vector<8x1xf32>
    %cst_138 = arith.constant dense<0.000000e+00> : vector<8xf32>
    %166 = vector.multi_reduction <add>, %162, %cst_138 [1] : vector<8x8xf32> to vector<8xf32>
    %167 = vector.shape_cast %166 : vector<8xf32> to vector<8x1xf32>
    %168 = arith.addf %165, %167 : vector<8x1xf32>
    %c3_139 = arith.constant 3 : index
    %c0_140 = arith.constant 0 : index
    %c0_141 = arith.constant 0 : index
    %169 = vector.load %arg11[%c3_139, %c0_140, %c0_141] : memref<4x8x1xf32, #tpu.memory_space<vmem>>, vector<1x8x1xf32>
    %170 = vector.shape_cast %169 : vector<1x8x1xf32> to vector<8x1xf32>
    %171 = vector.shape_cast %168 : vector<8x1xf32> to vector<1x8x1xf32>
    tpu.vector_store %arg11[%c3_139, %c0_140, %c0_141], %171 {strides = array<i32>} : memref<4x8x1xf32, #tpu.memory_space<vmem>>, vector<1x8x1xf32>,
    %172 = arith.truncf %162 : vector<8x8xf32> to vector<8x8xbf16>
    %cst_142 = arith.constant dense<0.000000e+00> : vector<8x8xf32>
    %173 = tpu.matmul %172, %145, %cst_142 {dimension_numbers = #tpu.dot_dimension_numbers<[1], [0], [0], [1], [0, 0, 1, 1], [], []>} : vector<8x8xbf16>, vector<8x8xbf16>, vector<8x8xf32> -> vector<8x8xf32>
    %c3_143 = arith.constant 3 : index
    %c0_144 = arith.constant 0 : index
    %c0_145 = arith.constant 0 : index
    %174 = vector.load %arg12[%c3_143, %c0_144, %c0_145] : memref<4x8x8xf32, #tpu.memory_space<vmem>>, vector<1x8x8xf32>
    %175 = vector.shape_cast %174 : vector<1x8x8xf32> to vector<8x8xf32>
    %176 = vector.broadcast %159 : vector<8x1xf32> to vector<8x8xf32>
    %177 = arith.mulf %176, %175 : vector<8x8xf32>
    %178 = arith.addf %177, %173 : vector<8x8xf32>
    %c3_146 = arith.constant 3 : index
    %c0_147 = arith.constant 0 : index
    %c0_148 = arith.constant 0 : index
    %179 = vector.load %arg12[%c3_146, %c0_147, %c0_148] : memref<4x8x8xf32, #tpu.memory_space<vmem>>, vector<1x8x8xf32>
    %180 = vector.shape_cast %179 : vector<1x8x8xf32> to vector<8x8xf32>
    %181 = vector.shape_cast %178 : vector<8x8xf32> to vector<1x8x8xf32>
    tpu.vector_store %arg12[%c3_146, %c0_147, %c0_148], %181 {strides = array<i32>} : memref<4x8x8xf32, #tpu.memory_space<vmem>>, vector<1x8x8xf32>,
    %c3_149 = arith.constant 3 : index
    %c0_150 = arith.constant 0 : index
    %c0_151 = arith.constant 0 : index
    %182 = vector.load %arg10[%c3_149, %c0_150, %c0_151] : memref<4x8x1xf32, #tpu.memory_space<vmem>>, vector<1x8x1xf32>
    %183 = vector.shape_cast %182 : vector<1x8x1xf32> to vector<8x1xf32>
    %184 = vector.shape_cast %157 : vector<8x1xf32> to vector<1x8x1xf32>
    tpu.vector_store %arg10[%c3_149, %c0_150, %c0_151], %184 {strides = array<i32>} : memref<4x8x1xf32, #tpu.memory_space<vmem>>, vector<1x8x1xf32>,
    %c0_i32_152 = arith.constant 0 : i32
    %185 = arith.cmpi eq, %arg2, %c0_i32_152 : i32
    %186 = arith.extui %185 : i1 to i32
    %c0_i32_153 = arith.constant 0 : i32
    %187 = arith.cmpi ne, %186, %c0_i32_153 : i32
    scf.if %187 {
      %c0_154 = arith.constant 0 : index
      %c0_155 = arith.constant 0 : index
      %c0_156 = arith.constant 0 : index
      %188 = vector.load %arg11[%c0_154, %c0_155, %c0_156] : memref<4x8x1xf32, #tpu.memory_space<vmem>>, vector<1x8x1xf32>
      %189 = vector.shape_cast %188 : vector<1x8x1xf32> to vector<8x1xf32>
      %190 = tpu.reciprocal %189 {approx = true} : vector<8x1xf32> -> vector<8x1xf32>
      %c0_157 = arith.constant 0 : index
      %c0_158 = arith.constant 0 : index
      %c0_159 = arith.constant 0 : index
      %191 = vector.load %arg12[%c0_157, %c0_158, %c0_159] : memref<4x8x8xf32, #tpu.memory_space<vmem>>, vector<1x8x8xf32>
      %192 = vector.shape_cast %191 : vector<1x8x8xf32> to vector<8x8xf32>
      %193 = vector.broadcast %190 : vector<8x1xf32> to vector<8x8xf32>
      %194 = arith.mulf %192, %193 : vector<8x8xf32>
      %195 = arith.truncf %194 : vector<8x8xf32> to vector<8x8xbf16>
      %c0_160 = arith.constant 0 : index
      %c0_161 = arith.constant 0 : index
      %196 = vector.load %arg13[%c0_160, %c0_161] : memref<8x32xbf16, #tpu.memory_space<vmem>>, vector<8x8xbf16>
      tpu.vector_store %arg13[%c0_160, %c0_161], %195 {strides = array<i32>} : memref<8x32xbf16, #tpu.memory_space<vmem>>, vector<8x8xbf16>,
      %c1_162 = arith.constant 1 : index
      %c0_163 = arith.constant 0 : index
      %c0_164 = arith.constant 0 : index
      %197 = vector.load %arg11[%c1_162, %c0_163, %c0_164] : memref<4x8x1xf32, #tpu.memory_space<vmem>>, vector<1x8x1xf32>
      %198 = vector.shape_cast %197 : vector<1x8x1xf32> to vector<8x1xf32>
      %199 = tpu.reciprocal %198 {approx = true} : vector<8x1xf32> -> vector<8x1xf32>
      %c1_165 = arith.constant 1 : index
      %c0_166 = arith.constant 0 : index
      %c0_167 = arith.constant 0 : index
      %200 = vector.load %arg12[%c1_165, %c0_166, %c0_167] : memref<4x8x8xf32, #tpu.memory_space<vmem>>, vector<1x8x8xf32>
      %201 = vector.shape_cast %200 : vector<1x8x8xf32> to vector<8x8xf32>
      %202 = vector.broadcast %199 : vector<8x1xf32> to vector<8x8xf32>
      %203 = arith.mulf %201, %202 : vector<8x8xf32>
      %204 = arith.truncf %203 : vector<8x8xf32> to vector<8x8xbf16>
      %c0_168 = arith.constant 0 : index
      %c8 = arith.constant 8 : index
      %205 = vector.load %arg13[%c0_168, %c8] : memref<8x32xbf16, #tpu.memory_space<vmem>>, vector<8x8xbf16>
      tpu.vector_store %arg13[%c0_168, %c8], %204 {strides = array<i32>} : memref<8x32xbf16, #tpu.memory_space<vmem>>, vector<8x8xbf16>,
      %c2_169 = arith.constant 2 : index
      %c0_170 = arith.constant 0 : index
      %c0_171 = arith.constant 0 : index
      %206 = vector.load %arg11[%c2_169, %c0_170, %c0_171] : memref<4x8x1xf32, #tpu.memory_space<vmem>>, vector<1x8x1xf32>
      %207 = vector.shape_cast %206 : vector<1x8x1xf32> to vector<8x1xf32>
      %208 = tpu.reciprocal %207 {approx = true} : vector<8x1xf32> -> vector<8x1xf32>
      %c2_172 = arith.constant 2 : index
      %c0_173 = arith.constant 0 : index
      %c0_174 = arith.constant 0 : index
      %209 = vector.load %arg12[%c2_172, %c0_173, %c0_174] : memref<4x8x8xf32, #tpu.memory_space<vmem>>, vector<1x8x8xf32>
      %210 = vector.shape_cast %209 : vector<1x8x8xf32> to vector<8x8xf32>
      %211 = vector.broadcast %208 : vector<8x1xf32> to vector<8x8xf32>
      %212 = arith.mulf %210, %211 : vector<8x8xf32>
      %213 = arith.truncf %212 : vector<8x8xf32> to vector<8x8xbf16>
      %c0_175 = arith.constant 0 : index
      %c16 = arith.constant 16 : index
      %214 = vector.load %arg13[%c0_175, %c16] : memref<8x32xbf16, #tpu.memory_space<vmem>>, vector<8x8xbf16>
      tpu.vector_store %arg13[%c0_175, %c16], %213 {strides = array<i32>} : memref<8x32xbf16, #tpu.memory_space<vmem>>, vector<8x8xbf16>,
      %c3_176 = arith.constant 3 : index
      %c0_177 = arith.constant 0 : index
      %c0_178 = arith.constant 0 : index
      %215 = vector.load %arg11[%c3_176, %c0_177, %c0_178] : memref<4x8x1xf32, #tpu.memory_space<vmem>>, vector<1x8x1xf32>
      %216 = vector.shape_cast %215 : vector<1x8x1xf32> to vector<8x1xf32>
      %217 = tpu.reciprocal %216 {approx = true} : vector<8x1xf32> -> vector<8x1xf32>
      %c3_179 = arith.constant 3 : index
      %c0_180 = arith.constant 0 : index
      %c0_181 = arith.constant 0 : index
      %218 = vector.load %arg12[%c3_179, %c0_180, %c0_181] : memref<4x8x8xf32, #tpu.memory_space<vmem>>, vector<1x8x8xf32>
      %219 = vector.shape_cast %218 : vector<1x8x8xf32> to vector<8x8xf32>
      %220 = vector.broadcast %217 : vector<8x1xf32> to vector<8x8xf32>
      %221 = arith.mulf %219, %220 : vector<8x8xf32>
      %222 = arith.truncf %221 : vector<8x8xf32> to vector<8x8xbf16>
      %c0_182 = arith.constant 0 : index
      %c24 = arith.constant 24 : index
      %223 = vector.load %arg13[%c0_182, %c24] : memref<8x32xbf16, #tpu.memory_space<vmem>>, vector<8x8xbf16>
      tpu.vector_store %arg13[%c0_182, %c24], %222 {strides = array<i32>} : memref<8x32xbf16, #tpu.memory_space<vmem>>, vector<8x8xbf16>,
      %c0_183 = arith.constant 0 : index
      %c0_184 = arith.constant 0 : index
      %224 = vector.load %arg13[%c0_183, %c0_184] : memref<8x32xbf16, #tpu.memory_space<vmem>>, vector<8x32xbf16>
      %c0_185 = arith.constant 0 : index
      %c0_186 = arith.constant 0 : index
      %225 = vector.load %arg8[%c0_185, %c0_186] : memref<32x32xbf16, #tpu.memory_space<vmem>>, vector<32x32xbf16>
      %cst_187 = arith.constant dense<0.000000e+00> : vector<8x32xf32>
      %226 = tpu.matmul %224, %225, %cst_187 {dimension_numbers = #tpu.dot_dimension_numbers<[1], [0], [0], [1], [0, 0, 1, 1], [], []>} : vector<8x32xbf16>, vector<32x32xbf16>, vector<8x32xf32> -> vector<8x32xf32>
      %c0_188 = arith.constant 0 : index
      %c0_189 = arith.constant 0 : index
      %c0_190 = arith.constant 0 : index
      %227 = vector.load %arg9[%c0_188, %c0_189, %c0_190] : memref<1x8x32xf32, #tpu.memory_space<vmem>>, vector<1x8x32xf32>
      %228 = vector.shape_cast %227 : vector<1x8x32xf32> to vector<8x32xf32>
      %229 = vector.shape_cast %226 : vector<8x32xf32> to vector<1x8x32xf32>
      tpu.vector_store %arg9[%c0_188, %c0_189, %c0_190], %229 {strides = array<i32>} : memref<1x8x32xf32, #tpu.memory_space<vmem>>, vector<1x8x32xf32>,
    } else {
    }
    return
  }
  func.func @transform_0(%arg0: i32, %arg1: i32, %arg2: i32) -> (i32, i32, i32, i32) {
    %c0_i32 = arith.constant 0 : i32
    %c0_i32_0 = arith.constant 0 : i32
    %c0_i32_1 = arith.constant 0 : i32
    return %arg0, %c0_i32, %arg1, %c0_i32_0 : i32, i32, i32, i32
  }
  func.func @transform_1(%arg0: i32, %arg1: i32, %arg2: i32) -> (i32, i32, i32, i32) {
    %c0_i32 = arith.constant 0 : i32
    %c0_i32_0 = arith.constant 0 : i32
    %c0_i32_1 = arith.constant 0 : i32
    return %arg0, %c0_i32, %arg2, %c0_i32_0 : i32, i32, i32, i32
  }
  func.func @transform_2(%arg0: i32, %arg1: i32, %arg2: i32) -> (i32, i32, i32, i32) {
    %c0_i32 = arith.constant 0 : i32
    %c0_i32_0 = arith.constant 0 : i32
    %c0_i32_1 = arith.constant 0 : i32
    return %arg0, %c0_i32, %arg2, %c0_i32_0 : i32, i32, i32, i32
  }
  func.func @transform_3(%arg0: i32, %arg1: i32, %arg2: i32) -> (i32, i32, i32, i32) {
    %c0_i32 = arith.constant 0 : i32
    %c0_i32_0 = arith.constant 0 : i32
    %c0_i32_1 = arith.constant 0 : i32
    return %arg0, %c0_i32, %c0_i32_0, %arg2 : i32, i32, i32, i32
  }
  func.func @transform_4(%arg0: i32, %arg1: i32, %arg2: i32) -> (i32, i32, i32, i32) {
    %c0_i32 = arith.constant 0 : i32
    %c0_i32_0 = arith.constant 0 : i32
    return %arg0, %c0_i32, %arg1, %arg2 : i32, i32, i32, i32
  }
  func.func @transform_5(%arg0: i32, %arg1: i32, %arg2: i32) -> (i32, i32) {
    %c0_i32 = arith.constant 0 : i32
    %c0_i32_0 = arith.constant 0 : i32
    %c0_i32_1 = arith.constant 0 : i32
    return %c0_i32, %c0_i32_0 : i32, i32
  }
  func.func @transform_6(%arg0: i32, %arg1: i32, %arg2: i32) -> (i32, i32, i32) {
    %c0_i32 = arith.constant 0 : i32
    %c0_i32_0 = arith.constant 0 : i32
    return %arg0, %arg1, %c0_i32 : i32, i32, i32
  }
}

</mosaic_0001>

<llo_original>
// kernel: tpu_custom_call.1
$region0: #{tpu_custom_call.1}
  #allocation0 [shape = 'u32[]', space=smem, size = 0x4, offset = 0x4, fixed_abs, tag = 'smem constant byte address 0x4 - core index']
  #allocation1 [shape = 'u32[144,128]{1,0:T(1,128)}', space=vmem, size = 0x12000, scoped, tag = 'internal scratch']
  #allocation2 [shape = 'f32[4,8,1]{2,1,0:T(8,128)}', space=vmem, size = 0x4000, scoped, tag = 'scratch operand']
  #allocation3 [shape = 'f32[4,8,1]{2,1,0:T(8,128)}', space=vmem, size = 0x4000, scoped, tag = 'scratch operand']
  #allocation4 [shape = 'f32[4,8,8]{2,1,0:T(8,128)}', space=vmem, size = 0x4000, scoped, tag = 'scratch operand']
  #allocation5 [shape = 'bf16[8,32]{1,0:T(8,128)(2,1)}', space=vmem, size = 0x800, scoped, tag = 'scratch operand']
  %s0 = inlined_call_operand.hbm [shape: bf16[2,4,8,8], index: 0, kind: input, shape index: {}]
  %s1 = inlined_call_operand.hbm [shape: bf16[2,4,8,8], index: 1, kind: input, shape index: {}]
  %s2 = inlined_call_operand.hbm [shape: bf16[2,4,8,8], index: 2, kind: input, shape index: {}]
  %s3 = inlined_call_operand.vmem [shape: f32[2,1,1,8], index: 3, kind: input, shape index: {}]
  %s4 = inlined_call_operand.hbm [shape: bf16[2,4,8,8], index: 4, kind: input, shape index: {}]
  %s5 = inlined_call_operand.vmem [shape: bf16[32,32], index: 5, kind: input, shape index: {}]
  %s6 = inlined_call_operand.hbm [shape: f32[2,8,32], index: 6, kind: output, shape index: {}]
  %s7 = sld [smem:[#allocation0]]
  $region81: #{tpu_custom_call.1} parent=0
    _
  %s9 = ssub.s32 1, %s7
  %s10 = scalar_select 0, %s9, %s7
  $region1: #{tpu_custom_call.1} parent=0
    #allocation6 [shape = 'u8[16384]{0}', space=vmem, size = 0x4000, scoped, tag = 'input window, operand 0']
    #allocation7 [shape = 's32[2]{0}', space=sflag, size = 0x8, scoped, tag = 'scoped memory for tpu_custom_call.1']
    #allocation8 [shape = 's32[2]{0}', space=sflag, size = 0x8, scoped, tag = 'scoped memory for tpu_custom_call.1']
    #allocation9 [shape = 'u8[16384]{0}', space=vmem, size = 0x4000, scoped, tag = 'input window, operand 1']
    #allocation10 [shape = 's32[2]{0}', space=sflag, size = 0x8, scoped, tag = 'scoped memory for tpu_custom_call.1']
    #allocation11 [shape = 'u8[16384]{0}', space=vmem, size = 0x4000, scoped, tag = 'input window, operand 2']
    #allocation12 [shape = 'u8[16384]{0}', space=vmem, size = 0x4000, scoped, tag = 'input window, operand 4']
    #allocation13 [shape = 's32[2]{0}', space=sflag, size = 0x8, scoped, tag = 'scoped memory for tpu_custom_call.1']
    #allocation14 [shape = 'u8[8192]{0}', space=vmem, size = 0x2000, scoped, tag = 'output window, operand 0']
    %11 = vsyncpa [#allocation7], 0
    %s12 = scalar_lea.sflag [#allocation7], 1
    %13 = vsyncpa %s12, 0
    %14 = vsyncpa [#allocation10], 0
    %s15 = scalar_lea.sflag [#allocation10], 1
    %16 = vsyncpa %s15, 0
    %17 = vsyncpa [#allocation13], 0
    %s18 = scalar_lea.sflag [#allocation13], 1
    %19 = vsyncpa %s18, 0
    %20 = vsyncpa [#allocation8], 0
    %s21 = scalar_lea.sflag [#allocation8], 1
    %22 = vsyncpa %s21, 0
    loop: start=0, step=1, limit=4
    $region2: #{tpu_custom_call.1} parent=1 // loop_pre_header
      _
    $region3: #{tpu_custom_call.1} parent=1 // loop_header
      %s24 = sphi 0, %s28
      %p25 = scmp.ge.s32.totalorder %s24, 4
      %s31 = sphi 0, %s50
      %s32 = sphi 0, %s46
      %s33 = sphi 0, %s42
      %s34 = sphi 0, %s31
      %s35 = sphi 0, %s32
      %s36 = sphi 0, %s33
      %s37 = sphi 0, %s34
      %s38 = sphi 0, %s35
      %s39 = sphi 0, %s36
      %s55 = sphi 0, %s57
      %s58 = sphi 0, %s55
      %s59 = sphi 0, %s58
      %s75 = sphi 0, %s59
      %s83 = sphi 0, %s85
      %s86 = sphi 0, %s83
      %s87 = sphi 0, %s86
      %s103 = sphi 0, %s87
      %s111 = sphi 0, %s113
      %s114 = sphi 0, %s111
      %s115 = sphi 0, %s114
      %s131 = sphi 0, %s115
      %s139 = sphi 0, %s141
      %s142 = sphi 0, %s139
      %s143 = sphi 0, %s142
      %s159 = sphi 0, %s143
      %s169 = sphi 0, %s171
      %s172 = sphi 0, %s169
      %s173 = sphi 0, %s172
      %s189 = sphi 0, %s173
      %s193 = sphi 0, %s193
      %s195 = sphi 0, %s193
      %s196 = sphi 0, %s195
      %s210 = sphi 0, %s196
      %s218 = sphi 0, %s220
      %s221 = sphi 0, %s218
      %s222 = sphi 0, %s221
      %s238 = sphi 0, %s222
    $region4: #{tpu_custom_call.1} parent=1 // loop_header_branch
      %27 = sbr.rel (%p25) target = $region8
    $region5: #{tpu_custom_call.1} parent=1 // loop_body
      %s29 = ssub.s32 %s24, 1
      %s30 = ssub.s32 %s24, 2
      %s40 = sadd.s32 1, %s33
      %p41 = scmp.ge.s32.totalorder %s40, 1
      %s42 = scalar_select %p41, 0, %s40
      %s43 = sadd.s32 1, %s32
      %s44 = scalar_select %p41, %s43, %s32
      %p45 = scmp.ge.s32.totalorder %s44, 1
      %s46 = scalar_select %p45, 0, %s44
      %s47 = sadd.s32 1, %s31
      %s48 = scalar_select %p45, %s47, %s31
      %p49 = scmp.ge.s32.totalorder %s48, 2
      %s50 = scalar_select %p49, 0, %s48
      %s51 = ssub.s32 %s31, %s50
      %s52 = ssub.s32 %s32, %s46
      %s53 = sor.u32 %s51, %s52
      %p54 = scmp.eq.s32.totalorder %s53, 0
      %s56 = sadd.s32 %s55, 1
      %s57 = scalar_select %p54, %s55, %s56
      %p60 = pneg %p54
      %p61 = scmp.eq.s32.totalorder %s24, 1
      %p62 = por %p60, %p61
      %p63 = scmp.ne.s32.totalorder %s55, %s58
      %p64 = scmp.eq.s32.totalorder %s24, 0
      %p65 = por %p63, %p64
      %p66 = scmp.ne.s32.totalorder %s55, %s58
      %p67 = scmp.eq.s32.totalorder %s29, 1
      %p68 = por %p66, %p67
      %p69 = scmp.ne.s32.totalorder %s58, %s59
      %p70 = scmp.eq.s32.totalorder %s29, 0
      %p71 = por %p69, %p70
      %p72 = scmp.ne.s32.totalorder %s58, %s59
      %p73 = scmp.eq.s32.totalorder %s30, 1
      %p74 = por %p72, %p73
      %p76 = scmp.ne.s32.totalorder %s59, %s75
      %p77 = scmp.eq.s32.totalorder %s30, 0
      %p78 = por %p76, %p77
      %s79 = ssub.s32 %s31, %s50
      %s80 = ssub.s32 %s33, %s42
      %s81 = sor.u32 %s79, %s80
      %p82 = scmp.eq.s32.totalorder %s81, 0
      %s84 = sadd.s32 %s83, 1
      %s85 = scalar_select %p82, %s83, %s84
      %p88 = pneg %p82
      %p89 = scmp.eq.s32.totalorder %s24, 1
      %p90 = por %p88, %p89
      %p91 = scmp.ne.s32.totalorder %s83, %s86
      %p92 = scmp.eq.s32.totalorder %s24, 0
      %p93 = por %p91, %p92
      %p94 = scmp.ne.s32.totalorder %s83, %s86
      %p95 = scmp.eq.s32.totalorder %s29, 1
      %p96 = por %p94, %p95
      %p97 = scmp.ne.s32.totalorder %s86, %s87
      %p98 = scmp.eq.s32.totalorder %s29, 0
      %p99 = por %p97, %p98
      %p100 = scmp.ne.s32.totalorder %s86, %s87
      %p101 = scmp.eq.s32.totalorder %s30, 1
      %p102 = por %p100, %p101
      %p104 = scmp.ne.s32.totalorder %s87, %s103
      %p105 = scmp.eq.s32.totalorder %s30, 0
      %p106 = por %p104, %p105
      %s107 = ssub.s32 %s31, %s50
      %s108 = ssub.s32 %s33, %s42
      %s109 = sor.u32 %s107, %s108
      %p110 = scmp.eq.s32.totalorder %s109, 0
      %s112 = sadd.s32 %s111, 1
      %s113 = scalar_select %p110, %s111, %s112
      %p116 = pneg %p110
      %p117 = scmp.eq.s32.totalorder %s24, 1
      %p118 = por %p116, %p117
      %p119 = scmp.ne.s32.totalorder %s111, %s114
      %p120 = scmp.eq.s32.totalorder %s24, 0
      %p121 = por %p119, %p120
      %p122 = scmp.ne.s32.totalorder %s111, %s114
      %p123 = scmp.eq.s32.totalorder %s29, 1
      %p124 = por %p122, %p123
      %p125 = scmp.ne.s32.totalorder %s114, %s115
      %p126 = scmp.eq.s32.totalorder %s29, 0
      %p127 = por %p125, %p126
      %p128 = scmp.ne.s32.totalorder %s114, %s115
      %p129 = scmp.eq.s32.totalorder %s30, 1
      %p130 = por %p128, %p129
      %p132 = scmp.ne.s32.totalorder %s115, %s131
      %p133 = scmp.eq.s32.totalorder %s30, 0
      %p134 = por %p132, %p133
      %s135 = ssub.s32 %s31, %s50
      %s136 = ssub.s32 %s33, %s42
      %s137 = sor.u32 %s135, %s136
      %p138 = scmp.eq.s32.totalorder %s137, 0
      %s140 = sadd.s32 %s139, 1
      %s141 = scalar_select %p138, %s139, %s140
      %p144 = pneg %p138
      %p145 = scmp.eq.s32.totalorder %s24, 1
      %p146 = por %p144, %p145
      %p147 = scmp.ne.s32.totalorder %s139, %s142
      %p148 = scmp.eq.s32.totalorder %s24, 0
      %p149 = por %p147, %p148
      %p150 = scmp.ne.s32.totalorder %s139, %s142
      %p151 = scmp.eq.s32.totalorder %s29, 1
      %p152 = por %p150, %p151
      %p153 = scmp.ne.s32.totalorder %s142, %s143
      %p154 = scmp.eq.s32.totalorder %s29, 0
      %p155 = por %p153, %p154
      %p156 = scmp.ne.s32.totalorder %s142, %s143
      %p157 = scmp.eq.s32.totalorder %s30, 1
      %p158 = por %p156, %p157
      %p160 = scmp.ne.s32.totalorder %s143, %s159
      %p161 = scmp.eq.s32.totalorder %s30, 0
      %p162 = por %p160, %p161
      %s163 = ssub.s32 %s31, %s50
      %s164 = ssub.s32 %s32, %s46
      %s165 = sor.u32 %s163, %s164
      %s166 = ssub.s32 %s33, %s42
      %s167 = sor.u32 %s165, %s166
      %p168 = scmp.eq.s32.totalorder %s167, 0
      %s170 = sadd.s32 %s169, 1
      %s171 = scalar_select %p168, %s169, %s170
      %p174 = pneg %p168
      %p175 = scmp.eq.s32.totalorder %s24, 1
      %p176 = por %p174, %p175
      %p177 = scmp.ne.s32.totalorder %s169, %s172
      %p178 = scmp.eq.s32.totalorder %s24, 0
      %p179 = por %p177, %p178
      %p180 = scmp.ne.s32.totalorder %s169, %s172
      %p181 = scmp.eq.s32.totalorder %s29, 1
      %p182 = por %p180, %p181
      %p183 = scmp.ne.s32.totalorder %s172, %s173
      %p184 = scmp.eq.s32.totalorder %s29, 0
      %p185 = por %p183, %p184
      %p186 = scmp.ne.s32.totalorder %s172, %s173
      %p187 = scmp.eq.s32.totalorder %s30, 1
      %p188 = por %p186, %p187
      %p190 = scmp.ne.s32.totalorder %s173, %s189
      %p191 = scmp.eq.s32.totalorder %s30, 0
      %p192 = por %p190, %p191
      %s194 = sadd.s32 %s193, 1
      %p197 = scmp.eq.s32.totalorder %s24, 1
      %p198 = scmp.ne.s32.totalorder %s193, %s195
      %p199 = scmp.eq.s32.totalorder %s24, 0
      %p200 = por %p198, %p199
      %p201 = scmp.ne.s32.totalorder %s193, %s195
      %p202 = scmp.eq.s32.totalorder %s29, 1
      %p203 = por %p201, %p202
      %p204 = scmp.ne.s32.totalorder %s195, %s196
      %p205 = scmp.eq.s32.totalorder %s29, 0
      %p206 = por %p204, %p205
      %p207 = scmp.ne.s32.totalorder %s195, %s196
      %p208 = scmp.eq.s32.totalorder %s30, 1
      %p209 = por %p207, %p208
      %p211 = scmp.ne.s32.totalorder %s196, %s210
      %p212 = scmp.eq.s32.totalorder %s30, 0
      %p213 = por %p211, %p212
      %s214 = ssub.s32 %s31, %s50
      %s215 = ssub.s32 %s32, %s46
      %s216 = sor.u32 %s214, %s215
      %p217 = scmp.eq.s32.totalorder %s216, 0
      %s219 = sadd.s32 %s218, 1
      %s220 = scalar_select %p217, %s218, %s219
      %p223 = pneg %p217
      %p224 = scmp.eq.s32.totalorder %s24, 1
      %p225 = por %p223, %p224
      %p226 = scmp.ne.s32.totalorder %s218, %s221
      %p227 = scmp.eq.s32.totalorder %s24, 0
      %p228 = por %p226, %p227
      %p229 = scmp.ne.s32.totalorder %s218, %s221
      %p230 = scmp.eq.s32.totalorder %s29, 1
      %p231 = por %p229, %p230
      %p232 = scmp.ne.s32.totalorder %s221, %s222
      %p233 = scmp.eq.s32.totalorder %s29, 0
      %p234 = por %p232, %p233
      %p235 = scmp.ne.s32.totalorder %s221, %s222
      %p236 = scmp.eq.s32.totalorder %s30, 1
      %p237 = por %p235, %p236
      %p239 = scmp.ne.s32.totalorder %s222, %s238
      %p240 = scmp.eq.s32.totalorder %s30, 0
      %p241 = por %p239, %p240
      %p242 = scmp.le.s32.totalorder 1, %s24
      %p243 = scmp.lt.s32.totalorder %s24, 3
      %p244 = pnand %p242, %p243
      %p245 = pneg %p244
      // Predicated region
      $region9: #{tpu_custom_call.1} parent=5 // pred_check
        _
      $region10: #{tpu_custom_call.1} parent=5 // pred_check_branch
        %247 = sbr.rel (%p244) target = $region12
      $region11: #{tpu_custom_call.1} parent=5 // pred_region
        %s248 = ssub.s32 %s24, 1
        // Predicated region
        $region13: #{tpu_custom_call.1} parent=11 // pred_check
          %p249 = pneg %p206
        $region14: #{tpu_custom_call.1} parent=11 // pred_check_branch
          %251 = sbr.rel (%p249) target = $region16
        $region15: #{tpu_custom_call.1} parent=11 // pred_region
          _
        $region16: #{tpu_custom_call.1} parent=11 // pred_fallthru
          _
      $region12: #{tpu_custom_call.1} parent=5 // pred_fallthru
        _
      %p252 = scmp.lt.s32.totalorder %s24, 2
      // Predicated region
      $region17: #{tpu_custom_call.1} parent=5 // pred_check
        %p253 = pneg %p252
      $region18: #{tpu_custom_call.1} parent=5 // pred_check_branch
        %255 = sbr.rel (%p253) target = $region20
      $region19: #{tpu_custom_call.1} parent=5 // pred_region
        // Predicated region
        $region21: #{tpu_custom_call.1} parent=19 // pred_check
          %p256 = pneg %p65
        $region22: #{tpu_custom_call.1} parent=19 // pred_check_branch
          %258 = sbr.rel (%p256) target = $region24
        $region23: #{tpu_custom_call.1} parent=19 // pred_region
          %s259 = sand.u32 %s55, 1
          %s260 = scalar_lea.sflag [#allocation7], %s259
          %s261 = sand.u32 %s55, 1
          %s262 = smul.addr %s261, 16
          %s263 = scalar_lea.vmem [#allocation6], %s262
          %s265 = ssub.s32 256, 256
          %266 = vsyncadd %s260, %s265
          %s267 = smul.addr %s31, 4
          %s268 = sadd.s32 %s32, %s267
          %s269 = smul.addr %s268, 64
          %s270 = scalar_lea.hbm %s0, %s269
          %s271 = sshll.u32 %s263, 4
          %s272 = int_to_ptr.vmem [resolvable:$true] %s271
          %277 = dma.hbm_to_vmem [thread:$0]  %s270, 256, %s272, %s260, 64, 64, 4
        $region24: #{tpu_custom_call.1} parent=19 // pred_fallthru
          _
        // Predicated region
        $region25: #{tpu_custom_call.1} parent=19 // pred_check
          %p278 = pneg %p93
        $region26: #{tpu_custom_call.1} parent=19 // pred_check_branch
          %280 = sbr.rel (%p278) target = $region28
        $region27: #{tpu_custom_call.1} parent=19 // pred_region
          %s281 = sand.u32 %s24, 1
          %s282 = scalar_lea.sflag [#allocation10], %s281
          %s283 = sand.u32 %s83, 1
          %s284 = smul.addr %s283, 16
          %s285 = scalar_lea.vmem [#allocation9], %s284
          %s287 = ssub.s32 256, 256
          %288 = vsyncadd %s282, %s287
          %s289 = smul.addr %s31, 4
          %s290 = sadd.s32 %s33, %s289
          %s291 = smul.addr %s290, 64
          %s292 = scalar_lea.hbm %s1, %s291
          %s293 = sshll.u32 %s285, 4
          %s294 = int_to_ptr.vmem [resolvable:$true] %s293
          %299 = dma.hbm_to_vmem [thread:$0]  %s292, 256, %s294, %s282, 64, 64, 4
        $region28: #{tpu_custom_call.1} parent=19 // pred_fallthru
          _
        // Predicated region
        $region29: #{tpu_custom_call.1} parent=19 // pred_check
          %p300 = pneg %p121
        $region30: #{tpu_custom_call.1} parent=19 // pred_check_branch
          %302 = sbr.rel (%p300) target = $region32
        $region31: #{tpu_custom_call.1} parent=19 // pred_region
          %s303 = sand.u32 %s24, 1
          %s304 = scalar_lea.sflag [#allocation10], %s303
          %s305 = sand.u32 %s111, 1
          %s306 = smul.addr %s305, 16
          %s307 = scalar_lea.vmem [#allocation11], %s306
          %s309 = ssub.s32 256, 256
          %310 = vsyncadd %s304, %s309
          %s311 = smul.addr %s31, 4
          %s312 = sadd.s32 %s33, %s311
          %s313 = smul.addr %s312, 64
          %s314 = scalar_lea.hbm %s2, %s313
          %s315 = sshll.u32 %s307, 4
          %s316 = int_to_ptr.vmem [resolvable:$true] %s315
          %321 = dma.hbm_to_vmem [thread:$0]  %s314, 256, %s316, %s304, 64, 64, 4
        $region32: #{tpu_custom_call.1} parent=19 // pred_fallthru
          _
        // Predicated region
        $region33: #{tpu_custom_call.1} parent=19 // pred_check
          %p322 = pneg %p149
        $region34: #{tpu_custom_call.1} parent=19 // pred_check_branch
          %324 = sbr.rel (%p322) target = $region36
        $region35: #{tpu_custom_call.1} parent=19 // pred_region
          %p325 = scmp.lt.s32.totalorder %s31, 1
          %s326 = scalar_select %p325, %s31, 1
          %p327 = scmp.lt.s32.totalorder %s33, 0
          %s328 = scalar_select %p327, %s33, 0
          %s329 = sadd.s32 %s328, %s326
          %s330 = scalar_lea.vmem %s3, %s329
        $region36: #{tpu_custom_call.1} parent=19 // pred_fallthru
          _
        // Predicated region
        $region37: #{tpu_custom_call.1} parent=19 // pred_check
          %p331 = pneg %p179
        $region38: #{tpu_custom_call.1} parent=19 // pred_check_branch
          %333 = sbr.rel (%p331) target = $region40
        $region39: #{tpu_custom_call.1} parent=19 // pred_region
          %s334 = sand.u32 %s169, 1
          %s335 = scalar_lea.sflag [#allocation13], %s334
          %s336 = sand.u32 %s169, 1
          %s337 = smul.addr %s336, 16
          %s338 = scalar_lea.vmem [#allocation12], %s337
          %s340 = ssub.s32 256, 256
          %341 = vsyncadd %s335, %s340
          %s342 = sadd.s32 %s33, %s32
          %s343 = smul.addr %s31, 4
          %s344 = sadd.s32 %s342, %s343
          %s345 = smul.addr %s344, 64
          %s346 = scalar_lea.hbm %s4, %s345
          %s347 = sshll.u32 %s338, 4
          %s348 = int_to_ptr.vmem [resolvable:$true] %s347
          %353 = dma.hbm_to_vmem [thread:$0]  %s346, 256, %s348, %s335, 64, 64, 4
        $region40: #{tpu_custom_call.1} parent=19 // pred_fallthru
          _
      $region20: #{tpu_custom_call.1} parent=5 // pred_fallthru
        _
      %p354 = scmp.le.s32.totalorder 1, %s24
      %p355 = scmp.lt.s32.totalorder %s24, 3
      %p356 = pnand %p354, %p355
      %p357 = pneg %p356
      // Predicated region
      $region41: #{tpu_custom_call.1} parent=5 // pred_check
        _
      $region42: #{tpu_custom_call.1} parent=5 // pred_check_branch
        %359 = sbr.rel (%p356) target = $region44
      $region43: #{tpu_custom_call.1} parent=5 // pred_region
        %s360 = ssub.s32 %s24, 1
        %s361 = sand.u32 %s58, 1
        %s362 = scalar_lea.sflag [#allocation7], %s361
        %s363 = sand.u32 %s58, 1
        %s364 = smul.addr %s363, 16
        %s365 = scalar_lea.vmem [#allocation6], %s364
        // Predicated region
        $region45: #{tpu_custom_call.1} parent=43 // pred_check
          %p366 = pneg %p71
        $region46: #{tpu_custom_call.1} parent=43 // pred_check_branch
          %368 = sbr.rel (%p366) target = $region48
        $region47: #{tpu_custom_call.1} parent=43 // pred_region
          %369 = dma.done %s362, 256
        $region48: #{tpu_custom_call.1} parent=43 // pred_fallthru
          _
        %s370 = sand.u32 %s29, 1
        %s371 = scalar_lea.sflag [#allocation10], %s370
        %s372 = sand.u32 %s86, 1
        %s373 = smul.addr %s372, 16
        %s374 = scalar_lea.vmem [#allocation9], %s373
        // Predicated region
        $region49: #{tpu_custom_call.1} parent=43 // pred_check
          %p375 = pneg %p99
        $region50: #{tpu_custom_call.1} parent=43 // pred_check_branch
          %377 = sbr.rel (%p375) target = $region52
        $region51: #{tpu_custom_call.1} parent=43 // pred_region
          %378 = dma.done %s371, 256
        $region52: #{tpu_custom_call.1} parent=43 // pred_fallthru
          _
        %s379 = sand.u32 %s29, 1
        %s380 = scalar_lea.sflag [#allocation10], %s379
        %s381 = sand.u32 %s114, 1
        %s382 = smul.addr %s381, 16
        %s383 = scalar_lea.vmem [#allocation11], %s382
        // Predicated region
        $region53: #{tpu_custom_call.1} parent=43 // pred_check
          %p384 = pneg %p127
        $region54: #{tpu_custom_call.1} parent=43 // pred_check_branch
          %386 = sbr.rel (%p384) target = $region56
        $region55: #{tpu_custom_call.1} parent=43 // pred_region
          %387 = dma.done %s380, 256
        $region56: #{tpu_custom_call.1} parent=43 // pred_fallthru
          _
        %s388 = sand.u32 %s172, 1
        %s389 = scalar_lea.sflag [#allocation13], %s388
        %s390 = sand.u32 %s172, 1
        %s391 = smul.addr %s390, 16
        %s392 = scalar_lea.vmem [#allocation12], %s391
        // Predicated region
        $region57: #{tpu_custom_call.1} parent=43 // pred_check
          %p393 = pneg %p185
        $region58: #{tpu_custom_call.1} parent=43 // pred_check_branch
          %395 = sbr.rel (%p393) target = $region60
        $region59: #{tpu_custom_call.1} parent=43 // pred_region
          %396 = dma.done %s389, 256
        $region60: #{tpu_custom_call.1} parent=43 // pred_fallthru
          _
        %s397 = sand.u32 %s58, 1
        %s398 = scalar_lea.sflag [#allocation7], %s397
        %s399 = sand.u32 %s58, 1
        %s400 = smul.addr %s399, 16
        %s401 = scalar_lea.vmem [#allocation6], %s400
        %p402 = pneg %p71
        %p403 = pneg %p68
        %s404 = sand.u32 %s29, 1
        %s405 = scalar_lea.sflag [#allocation10], %s404
        %s406 = sand.u32 %s86, 1
        %s407 = smul.addr %s406, 16
        %s408 = scalar_lea.vmem [#allocation9], %s407
        %p409 = pneg %p99
        %p410 = pneg %p96
        %s411 = sand.u32 %s29, 1
        %s412 = scalar_lea.sflag [#allocation10], %s411
        %s413 = sand.u32 %s114, 1
        %s414 = smul.addr %s413, 16
        %s415 = scalar_lea.vmem [#allocation11], %s414
        %p416 = pneg %p127
        %p417 = pneg %p124
        %p418 = scmp.lt.s32.totalorder %s34, 1
        %s419 = scalar_select %p418, %s34, 1
        %p420 = scmp.lt.s32.totalorder %s36, 0
        %s421 = scalar_select %p420, %s36, 0
        %s422 = sadd.s32 %s421, %s419
        %s423 = scalar_lea.vmem %s3, %s422
        %p424 = pneg %p155
        %p425 = pneg %p152
        %s426 = sand.u32 %s172, 1
        %s427 = scalar_lea.sflag [#allocation13], %s426
        %s428 = sand.u32 %s172, 1
        %s429 = smul.addr %s428, 16
        %s430 = scalar_lea.vmem [#allocation12], %s429
        %p431 = pneg %p185
        %p432 = pneg %p182
        %p433 = pneg %p206
        %p434 = pneg %p203
        %p435 = pneg %p234
        %p436 = pneg %p231
        %s437 = sand.u32 %s221, 1
        %s438 = scalar_lea.sflag [#allocation8], %s437
        %s439 = sand.u32 %s221, 1
        %s440 = smul.addr %s439, 8
        %s441 = scalar_lea.vmem [#allocation14], %s440
        %p442 = scmp.lt.s32.totalorder %s34, 1
        %s443 = scalar_select %p442, %s34, 1
        %p444 = scmp.lt.s32.totalorder %s36, 0
        %s445 = scalar_select %p444, %s36, 0
        %s446 = sadd.s32 %s445, %s443
        %s447 = scalar_lea.vmem %s3, %s446
        %p449 = scmp.eq.s32.totalorder %s36, 0
        // Predicated region
        $region61: #{tpu_custom_call.1} parent=43 // pred_check
          %p450 = pneg %p449
        $region62: #{tpu_custom_call.1} parent=43 // pred_check_branch
          %452 = sbr.rel (%p450) target = $region64
        $region63: #{tpu_custom_call.1} parent=43 // pred_region
          %vm453 = vcmask 7168
          %454 = vst.msk [vmem:[#allocation2] sm:$0xff] %vm453, -inf
          %455 = vst.msk [vmem:[#allocation2 + $0x8] sm:$0xff] %vm453, -inf
          %456 = vst.msk [vmem:[#allocation2 + $0x10] sm:$0xff] %vm453, -inf
          %457 = vst.msk [vmem:[#allocation2 + $0x18] sm:$0xff] %vm453, -inf
          %458 = vst.msk [vmem:[#allocation3] sm:$0xff] %vm453, 0.0
          %459 = vst.msk [vmem:[#allocation3 + $0x8] sm:$0xff] %vm453, 0.0
          %460 = vst.msk [vmem:[#allocation3 + $0x10] sm:$0xff] %vm453, 0.0
          %461 = vst.msk [vmem:[#allocation3 + $0x18] sm:$0xff] %vm453, 0.0
          %vm462 = vcmask 64512
          %463 = vst.msk [vmem:[#allocation4] sm:$0xff] %vm462, 0.0
          %464 = vst.msk [vmem:[#allocation4 + $0x8] sm:$0xff] %vm462, 0.0
          %465 = vst.msk [vmem:[#allocation4 + $0x10] sm:$0xff] %vm462, 0.0
          %466 = vst.msk [vmem:[#allocation4 + $0x18] sm:$0xff] %vm462, 0.0
        $region64: #{tpu_custom_call.1} parent=43 // pred_fallthru
          _
        %v467 = vld [vmem:[%s447] sm:$0x1]
        %v468 = vld [vmem:[%s365] sm:$0xf]
        %v469 = vld [vmem:[%s374] sm:$0xf]
        %v470 = vld [vmem:[%s383] sm:$0xf]
        %v471 = vld [vmem:[%s392] sm:$0xf]
        %v472 = vunpack.c.l.bf16 %v471
        %vm473 = vcmask 64512
        %v475 = vsel %vm473, %v468, 0
        %v478 = vsel %vm473, %v469, 0
        %480 = vmatprep.subr.bf16.mxu0 0
        %481 = vmatpush1.bf16.xpose.msra.mxu0 %v478
        %482 = vmatprep.subr.bf16.mxu0 0
        %483 = vmatpush1.bf16.xpose.msra.mxu0 0
        %484 = vmatprep.subr.bf16.mxu0 0
        %485 = vmatpush1.bf16.xpose.msra.mxu0 0
        %486 = vmatprep.subr.bf16.mxu0 0
        %487 = vmatpush1.bf16.xpose.msra.mxu0 0
        %488 = vmatprep.subr.bf16.mxu0 0
        %489 = vmatpush1.bf16.xpose.msra.mxu0 0
        %490 = vmatprep.subr.bf16.mxu0 0
        %491 = vmatpush1.bf16.xpose.msra.mxu0 0
        %492 = vmatprep.subr.bf16.mxu0 0
        %493 = vmatpush1.bf16.xpose.msra.mxu0 0
        %494 = vmatprep.subr.bf16.mxu0 0
        %495 = vmatpush1.bf16.xpose.msra.mxu0 0
        %496 = vmatprep.subr.bf16.mxu0 0
        %497 = vmatpush1.bf16.xpose.msra.mxu0 0
        %498 = vmatprep.subr.bf16.mxu0 0
        %499 = vmatpush1.bf16.xpose.msra.mxu0 0
        %500 = vmatprep.subr.bf16.mxu0 0
        %501 = vmatpush1.bf16.xpose.msra.mxu0 0
        %502 = vmatprep.subr.bf16.mxu0 0
        %503 = vmatpush1.bf16.xpose.msra.mxu0 0
        %504 = vmatprep.subr.bf16.mxu0 0
        %505 = vmatpush1.bf16.xpose.msra.mxu0 0
        %506 = vmatprep.subr.bf16.mxu0 0
        %507 = vmatpush1.bf16.xpose.msra.mxu0 0
        %508 = vmatprep.subr.bf16.mxu0 0
        %509 = vmatpush1.bf16.xpose.msra.mxu0 0
        %510 = vmatprep.subr.bf16.mxu0 0
        %511 = vmatpush1.bf16.xpose.msra.mxu0 0
        %512 = vmatprep.mubr.bf16.mxu0 0
        %513 = vmatmul.mubr.bf16.gmra.mrb[0].mxu0 %v475
        %v514 = vpop.f32.mrb[0].mxu0
        %v515 = vadd.f32 %v472, %v514
        %v516 = vpop.f32.mrb[0].mxu0
        %v517 = vpop.f32.mrb[0].mxu0
        %v518 = vpop.f32.mrb[0].mxu0
        %519 = vdwg.mxu0
        %v521 = vlaneseq
        %v522 = vshrl.u32 %v521, 7
        %v523 = vsub.s32 0, %v522
        %v524 = vrot.slane %v467, %v523
        %v526 = vadd.f32 %v515, %v524
        %v527 = vld [vmem:[#allocation2] sm:$0xff]
        %v528 = vsel %vm473, %v526, -inf
        %529 = vmax.xlane.f32.xlu0 %v528
        %v530 = vpop.xlane.xlu0 %529
        %v531 = vmax.f32 %v527, %v530
        %v532 = vsub.f32 %v527, %v531
        %v533 = vmul.f32 %v532, 1.442695
        %v534 = vpow.pop %v533
        %536 = vset.pattern.permute.xlu0 0
        %537 = vperm.xlu0 %536, %v531
        %v538 = vpop.permute.xlu0 %537
        %v540 = vsub.f32 %v526, %v538
        %v541 = vmul.f32 %v540, 1.442695
        %v542 = vpow.pop %v541
        %v543 = vld [vmem:[#allocation3] sm:$0xff]
        %v544 = vmul.f32 %v534, %v543
        %v545 = vsel %vm473, %v542, 0.0
        %546 = vadd.xlane.f32.xlu0 %v545
        %v547 = vpop.xlane.xlu0 %546
        %v548 = vadd.f32 %v544, %v547
        %vm549 = vcmask 7168
        %550 = vst.msk [vmem:[#allocation3] sm:$0xff] %vm549, %v548
        %v551 = vpack.c.bf16 %v542, %v542
        %v553 = vsel %vm473, %v551, 0
        %vm555 = vcmask 1043456
        %v557 = vsel %vm555, %v470, 0
        %559 = vmatprep.subr.bf16.mxu0 0
        %560 = vmatpush1.bf16.msra.mxu0 %v557
        %561 = vmatprep.subr.bf16.mxu0 0
        %562 = vmatpush1.bf16.msra.mxu0 0
        %563 = vmatprep.subr.bf16.mxu0 0
        %564 = vmatpush1.bf16.msra.mxu0 0
        %565 = vmatprep.subr.bf16.mxu0 0
        %566 = vmatpush1.bf16.msra.mxu0 0
        %567 = vmatprep.subr.bf16.mxu0 0
        %568 = vmatpush1.bf16.msra.mxu0 0
        %569 = vmatprep.subr.bf16.mxu0 0
        %570 = vmatpush1.bf16.msra.mxu0 0
        %571 = vmatprep.subr.bf16.mxu0 0
        %572 = vmatpush1.bf16.msra.mxu0 0
        %573 = vmatprep.subr.bf16.mxu0 0
        %574 = vmatpush1.bf16.msra.mxu0 0
        %575 = vmatprep.subr.bf16.mxu0 0
        %576 = vmatpush1.bf16.msra.mxu0 0
        %577 = vmatprep.subr.bf16.mxu0 0
        %578 = vmatpush1.bf16.msra.mxu0 0
        %579 = vmatprep.subr.bf16.mxu0 0
        %580 = vmatpush1.bf16.msra.mxu0 0
        %581 = vmatprep.subr.bf16.mxu0 0
        %582 = vmatpush1.bf16.msra.mxu0 0
        %583 = vmatprep.subr.bf16.mxu0 0
        %584 = vmatpush1.bf16.msra.mxu0 0
        %585 = vmatprep.subr.bf16.mxu0 0
        %586 = vmatpush1.bf16.msra.mxu0 0
        %587 = vmatprep.subr.bf16.mxu0 0
        %588 = vmatpush1.bf16.msra.mxu0 0
        %589 = vmatprep.subr.bf16.mxu0 0
        %590 = vmatpush1.bf16.msra.mxu0 0
        %591 = vmatprep.mubr.bf16.mxu0 0
        %592 = vmatmul.mubr.bf16.gmra.mrb[0].mxu0 %v553
        %v593 = vpop.f32.mrb[0].mxu0
        %v594 = vadd.f32 0.0, %v593
        %v595 = vpop.f32.mrb[0].mxu0
        %v596 = vpop.f32.mrb[0].mxu0
        %v597 = vpop.f32.mrb[0].mxu0
        %598 = vdwg.mxu0
        %v599 = vld [vmem:[#allocation4] sm:$0xff]
        %601 = vset.pattern.permute.xlu0 0
        %602 = vperm.xlu0 %601, %v534
        %v603 = vpop.permute.xlu0 %602
        %v605 = vmul.f32 %v603, %v599
        %v606 = vadd.f32 %v605, %v594
        %607 = vst.msk [vmem:[#allocation4] sm:$0xff] %vm473, %v606
        %608 = vst.msk [vmem:[#allocation2] sm:$0xff] %vm549, %v531
        %s609 = scalar_lea.vmem %s365, 4 [#allocation6]
        %v610 = vld [vmem:[%s609] sm:$0xf]
        %s611 = scalar_lea.vmem %s374, 4 [#allocation9]
        %v612 = vld [vmem:[%s611] sm:$0xf]
        %s613 = scalar_lea.vmem %s383, 4 [#allocation11]
        %v614 = vld [vmem:[%s613] sm:$0xf]
        %s615 = scalar_lea.vmem %s392, 4 [#allocation12]
        %v616 = vld [vmem:[%s615] sm:$0xf]
        %v617 = vunpack.c.l.bf16 %v616
        %v619 = vsel %vm473, %v610, 0
        %v622 = vsel %vm473, %v612, 0
        %624 = vmatprep.subr.bf16.mxu0 0
        %625 = vmatpush1.bf16.xpose.msra.mxu0 %v622
        %626 = vmatprep.subr.bf16.mxu0 0
        %627 = vmatpush1.bf16.xpose.msra.mxu0 0
        %628 = vmatprep.subr.bf16.mxu0 0
        %629 = vmatpush1.bf16.xpose.msra.mxu0 0
        %630 = vmatprep.subr.bf16.mxu0 0
        %631 = vmatpush1.bf16.xpose.msra.mxu0 0
        %632 = vmatprep.subr.bf16.mxu0 0
        %633 = vmatpush1.bf16.xpose.msra.mxu0 0
        %634 = vmatprep.subr.bf16.mxu0 0
        %635 = vmatpush1.bf16.xpose.msra.mxu0 0
        %636 = vmatprep.subr.bf16.mxu0 0
        %637 = vmatpush1.bf16.xpose.msra.mxu0 0
        %638 = vmatprep.subr.bf16.mxu0 0
        %639 = vmatpush1.bf16.xpose.msra.mxu0 0
        %640 = vmatprep.subr.bf16.mxu0 0
        %641 = vmatpush1.bf16.xpose.msra.mxu0 0
        %642 = vmatprep.subr.bf16.mxu0 0
        %643 = vmatpush1.bf16.xpose.msra.mxu0 0
        %644 = vmatprep.subr.bf16.mxu0 0
        %645 = vmatpush1.bf16.xpose.msra.mxu0 0
        %646 = vmatprep.subr.bf16.mxu0 0
        %647 = vmatpush1.bf16.xpose.msra.mxu0 0
        %648 = vmatprep.subr.bf16.mxu0 0
        %649 = vmatpush1.bf16.xpose.msra.mxu0 0
        %650 = vmatprep.subr.bf16.mxu0 0
        %651 = vmatpush1.bf16.xpose.msra.mxu0 0
        %652 = vmatprep.subr.bf16.mxu0 0
        %653 = vmatpush1.bf16.xpose.msra.mxu0 0
        %654 = vmatprep.subr.bf16.mxu0 0
        %655 = vmatpush1.bf16.xpose.msra.mxu0 0
        %656 = vmatprep.mubr.bf16.mxu0 0
        %657 = vmatmul.mubr.bf16.gmra.mrb[0].mxu0 %v619
        %v658 = vpop.f32.mrb[0].mxu0
        %v659 = vadd.f32 %v617, %v658
        %v660 = vpop.f32.mrb[0].mxu0
        %v661 = vpop.f32.mrb[0].mxu0
        %v662 = vpop.f32.mrb[0].mxu0
        %663 = vdwg.mxu0
        %v664 = vadd.f32 %v659, %v524
        %s665 = scalar_lea.vmem [#allocation2], 8
        %v666 = vld [vmem:[%s665] sm:$0xff]
        %v667 = vsel %vm473, %v664, -inf
        %668 = vmax.xlane.f32.xlu0 %v667
        %v669 = vpop.xlane.xlu0 %668
        %v670 = vmax.f32 %v666, %v669
        %v671 = vsub.f32 %v666, %v670
        %v672 = vmul.f32 %v671, 1.442695
        %v673 = vpow.pop %v672
        %675 = vset.pattern.permute.xlu0 0
        %676 = vperm.xlu0 %675, %v670
        %v677 = vpop.permute.xlu0 %676
        %v679 = vsub.f32 %v664, %v677
        %v680 = vmul.f32 %v679, 1.442695
        %v681 = vpow.pop %v680
        %s682 = scalar_lea.vmem [#allocation3], 8
        %v683 = vld [vmem:[%s682] sm:$0xff]
        %v684 = vmul.f32 %v673, %v683
        %v685 = vsel %vm473, %v681, 0.0
        %686 = vadd.xlane.f32.xlu0 %v685
        %v687 = vpop.xlane.xlu0 %686
        %v688 = vadd.f32 %v684, %v687
        %689 = vst.msk [vmem:[%s682] sm:$0xff] %vm549, %v688
        %v690 = vpack.c.bf16 %v681, %v681
        %v692 = vsel %vm473, %v690, 0
        %v695 = vsel %vm555, %v614, 0
        %697 = vmatprep.subr.bf16.mxu0 0
        %698 = vmatpush1.bf16.msra.mxu0 %v695
        %699 = vmatprep.subr.bf16.mxu0 0
        %700 = vmatpush1.bf16.msra.mxu0 0
        %701 = vmatprep.subr.bf16.mxu0 0
        %702 = vmatpush1.bf16.msra.mxu0 0
        %703 = vmatprep.subr.bf16.mxu0 0
        %704 = vmatpush1.bf16.msra.mxu0 0
        %705 = vmatprep.subr.bf16.mxu0 0
        %706 = vmatpush1.bf16.msra.mxu0 0
        %707 = vmatprep.subr.bf16.mxu0 0
        %708 = vmatpush1.bf16.msra.mxu0 0
        %709 = vmatprep.subr.bf16.mxu0 0
        %710 = vmatpush1.bf16.msra.mxu0 0
        %711 = vmatprep.subr.bf16.mxu0 0
        %712 = vmatpush1.bf16.msra.mxu0 0
        %713 = vmatprep.subr.bf16.mxu0 0
        %714 = vmatpush1.bf16.msra.mxu0 0
        %715 = vmatprep.subr.bf16.mxu0 0
        %716 = vmatpush1.bf16.msra.mxu0 0
        %717 = vmatprep.subr.bf16.mxu0 0
        %718 = vmatpush1.bf16.msra.mxu0 0
        %719 = vmatprep.subr.bf16.mxu0 0
        %720 = vmatpush1.bf16.msra.mxu0 0
        %721 = vmatprep.subr.bf16.mxu0 0
        %722 = vmatpush1.bf16.msra.mxu0 0
        %723 = vmatprep.subr.bf16.mxu0 0
        %724 = vmatpush1.bf16.msra.mxu0 0
        %725 = vmatprep.subr.bf16.mxu0 0
        %726 = vmatpush1.bf16.msra.mxu0 0
        %727 = vmatprep.subr.bf16.mxu0 0
        %728 = vmatpush1.bf16.msra.mxu0 0
        %729 = vmatprep.mubr.bf16.mxu0 0
        %730 = vmatmul.mubr.bf16.gmra.mrb[0].mxu0 %v692
        %v731 = vpop.f32.mrb[0].mxu0
        %v732 = vadd.f32 0.0, %v731
        %v733 = vpop.f32.mrb[0].mxu0
        %v734 = vpop.f32.mrb[0].mxu0
        %v735 = vpop.f32.mrb[0].mxu0
        %736 = vdwg.mxu0
        %s737 = scalar_lea.vmem [#allocation4], 8
        %v738 = vld [vmem:[%s737] sm:$0xff]
        %740 = vset.pattern.permute.xlu0 0
        %741 = vperm.xlu0 %740, %v673
        %v742 = vpop.permute.xlu0 %741
        %v744 = vmul.f32 %v742, %v738
        %v745 = vadd.f32 %v744, %v732
        %746 = vst.msk [vmem:[%s737] sm:$0xff] %vm473, %v745
        %747 = vst.msk [vmem:[%s665] sm:$0xff] %vm549, %v670
        %s748 = scalar_lea.vmem %s365, 8 [#allocation6]
        %v749 = vld [vmem:[%s748] sm:$0xf]
        %s750 = scalar_lea.vmem %s374, 8 [#allocation9]
        %v751 = vld [vmem:[%s750] sm:$0xf]
        %s752 = scalar_lea.vmem %s383, 8 [#allocation11]
        %v753 = vld [vmem:[%s752] sm:$0xf]
        %s754 = scalar_lea.vmem %s392, 8 [#allocation12]
        %v755 = vld [vmem:[%s754] sm:$0xf]
        %v756 = vunpack.c.l.bf16 %v755
        %v758 = vsel %vm473, %v749, 0
        %v761 = vsel %vm473, %v751, 0
        %763 = vmatprep.subr.bf16.mxu0 0
        %764 = vmatpush1.bf16.xpose.msra.mxu0 %v761
        %765 = vmatprep.subr.bf16.mxu0 0
        %766 = vmatpush1.bf16.xpose.msra.mxu0 0
        %767 = vmatprep.subr.bf16.mxu0 0
        %768 = vmatpush1.bf16.xpose.msra.mxu0 0
        %769 = vmatprep.subr.bf16.mxu0 0
        %770 = vmatpush1.bf16.xpose.msra.mxu0 0
        %771 = vmatprep.subr.bf16.mxu0 0
        %772 = vmatpush1.bf16.xpose.msra.mxu0 0
        %773 = vmatprep.subr.bf16.mxu0 0
        %774 = vmatpush1.bf16.xpose.msra.mxu0 0
        %775 = vmatprep.subr.bf16.mxu0 0
        %776 = vmatpush1.bf16.xpose.msra.mxu0 0
        %777 = vmatprep.subr.bf16.mxu0 0
        %778 = vmatpush1.bf16.xpose.msra.mxu0 0
        %779 = vmatprep.subr.bf16.mxu0 0
        %780 = vmatpush1.bf16.xpose.msra.mxu0 0
        %781 = vmatprep.subr.bf16.mxu0 0
        %782 = vmatpush1.bf16.xpose.msra.mxu0 0
        %783 = vmatprep.subr.bf16.mxu0 0
        %784 = vmatpush1.bf16.xpose.msra.mxu0 0
        %785 = vmatprep.subr.bf16.mxu0 0
        %786 = vmatpush1.bf16.xpose.msra.mxu0 0
        %787 = vmatprep.subr.bf16.mxu0 0
        %788 = vmatpush1.bf16.xpose.msra.mxu0 0
        %789 = vmatprep.subr.bf16.mxu0 0
        %790 = vmatpush1.bf16.xpose.msra.mxu0 0
        %791 = vmatprep.subr.bf16.mxu0 0
        %792 = vmatpush1.bf16.xpose.msra.mxu0 0
        %793 = vmatprep.subr.bf16.mxu0 0
        %794 = vmatpush1.bf16.xpose.msra.mxu0 0
        %795 = vmatprep.mubr.bf16.mxu0 0
        %796 = vmatmul.mubr.bf16.gmra.mrb[0].mxu0 %v758
        %v797 = vpop.f32.mrb[0].mxu0
        %v798 = vadd.f32 %v756, %v797
        %v799 = vpop.f32.mrb[0].mxu0
        %v800 = vpop.f32.mrb[0].mxu0
        %v801 = vpop.f32.mrb[0].mxu0
        %802 = vdwg.mxu0
        %v803 = vadd.f32 %v798, %v524
        %s804 = scalar_lea.vmem [#allocation2], 16
        %v805 = vld [vmem:[%s804] sm:$0xff]
        %v806 = vsel %vm473, %v803, -inf
        %807 = vmax.xlane.f32.xlu0 %v806
        %v808 = vpop.xlane.xlu0 %807
        %v809 = vmax.f32 %v805, %v808
        %v810 = vsub.f32 %v805, %v809
        %v811 = vmul.f32 %v810, 1.442695
        %v812 = vpow.pop %v811
        %814 = vset.pattern.permute.xlu0 0
        %815 = vperm.xlu0 %814, %v809
        %v816 = vpop.permute.xlu0 %815
        %v818 = vsub.f32 %v803, %v816
        %v819 = vmul.f32 %v818, 1.442695
        %v820 = vpow.pop %v819
        %s821 = scalar_lea.vmem [#allocation3], 16
        %v822 = vld [vmem:[%s821] sm:$0xff]
        %v823 = vmul.f32 %v812, %v822
        %v824 = vsel %vm473, %v820, 0.0
        %825 = vadd.xlane.f32.xlu0 %v824
        %v826 = vpop.xlane.xlu0 %825
        %v827 = vadd.f32 %v823, %v826
        %828 = vst.msk [vmem:[%s821] sm:$0xff] %vm549, %v827
        %v829 = vpack.c.bf16 %v820, %v820
        %v831 = vsel %vm473, %v829, 0
        %v834 = vsel %vm555, %v753, 0
        %836 = vmatprep.subr.bf16.mxu0 0
        %837 = vmatpush1.bf16.msra.mxu0 %v834
        %838 = vmatprep.subr.bf16.mxu0 0
        %839 = vmatpush1.bf16.msra.mxu0 0
        %840 = vmatprep.subr.bf16.mxu0 0
        %841 = vmatpush1.bf16.msra.mxu0 0
        %842 = vmatprep.subr.bf16.mxu0 0
        %843 = vmatpush1.bf16.msra.mxu0 0
        %844 = vmatprep.subr.bf16.mxu0 0
        %845 = vmatpush1.bf16.msra.mxu0 0
        %846 = vmatprep.subr.bf16.mxu0 0
        %847 = vmatpush1.bf16.msra.mxu0 0
        %848 = vmatprep.subr.bf16.mxu0 0
        %849 = vmatpush1.bf16.msra.mxu0 0
        %850 = vmatprep.subr.bf16.mxu0 0
        %851 = vmatpush1.bf16.msra.mxu0 0
        %852 = vmatprep.subr.bf16.mxu0 0
        %853 = vmatpush1.bf16.msra.mxu0 0
        %854 = vmatprep.subr.bf16.mxu0 0
        %855 = vmatpush1.bf16.msra.mxu0 0
        %856 = vmatprep.subr.bf16.mxu0 0
        %857 = vmatpush1.bf16.msra.mxu0 0
        %858 = vmatprep.subr.bf16.mxu0 0
        %859 = vmatpush1.bf16.msra.mxu0 0
        %860 = vmatprep.subr.bf16.mxu0 0
        %861 = vmatpush1.bf16.msra.mxu0 0
        %862 = vmatprep.subr.bf16.mxu0 0
        %863 = vmatpush1.bf16.msra.mxu0 0
        %864 = vmatprep.subr.bf16.mxu0 0
        %865 = vmatpush1.bf16.msra.mxu0 0
        %866 = vmatprep.subr.bf16.mxu0 0
        %867 = vmatpush1.bf16.msra.mxu0 0
        %868 = vmatprep.mubr.bf16.mxu0 0
        %869 = vmatmul.mubr.bf16.gmra.mrb[0].mxu0 %v831
        %v870 = vpop.f32.mrb[0].mxu0
        %v871 = vadd.f32 0.0, %v870
        %v872 = vpop.f32.mrb[0].mxu0
        %v873 = vpop.f32.mrb[0].mxu0
        %v874 = vpop.f32.mrb[0].mxu0
        %875 = vdwg.mxu0
        %s876 = scalar_lea.vmem [#allocation4], 16
        %v877 = vld [vmem:[%s876] sm:$0xff]
        %879 = vset.pattern.permute.xlu0 0
        %880 = vperm.xlu0 %879, %v812
        %v881 = vpop.permute.xlu0 %880
        %v883 = vmul.f32 %v881, %v877
        %v884 = vadd.f32 %v883, %v871
        %885 = vst.msk [vmem:[%s876] sm:$0xff] %vm473, %v884
        %886 = vst.msk [vmem:[%s804] sm:$0xff] %vm549, %v809
        %s887 = scalar_lea.vmem %s365, 12 [#allocation6]
        %v888 = vld [vmem:[%s887] sm:$0xf]
        %s889 = scalar_lea.vmem %s374, 12 [#allocation9]
        %v890 = vld [vmem:[%s889] sm:$0xf]
        %s891 = scalar_lea.vmem %s383, 12 [#allocation11]
        %v892 = vld [vmem:[%s891] sm:$0xf]
        %s893 = scalar_lea.vmem %s392, 12 [#allocation12]
        %v894 = vld [vmem:[%s893] sm:$0xf]
        %v895 = vunpack.c.l.bf16 %v894
        %v897 = vsel %vm473, %v888, 0
        %v900 = vsel %vm473, %v890, 0
        %902 = vmatprep.subr.bf16.mxu0 0
        %903 = vmatpush1.bf16.xpose.msra.mxu0 %v900
        %904 = vmatprep.subr.bf16.mxu0 0
        %905 = vmatpush1.bf16.xpose.msra.mxu0 0
        %906 = vmatprep.subr.bf16.mxu0 0
        %907 = vmatpush1.bf16.xpose.msra.mxu0 0
        %908 = vmatprep.subr.bf16.mxu0 0
        %909 = vmatpush1.bf16.xpose.msra.mxu0 0
        %910 = vmatprep.subr.bf16.mxu0 0
        %911 = vmatpush1.bf16.xpose.msra.mxu0 0
        %912 = vmatprep.subr.bf16.mxu0 0
        %913 = vmatpush1.bf16.xpose.msra.mxu0 0
        %914 = vmatprep.subr.bf16.mxu0 0
        %915 = vmatpush1.bf16.xpose.msra.mxu0 0
        %916 = vmatprep.subr.bf16.mxu0 0
        %917 = vmatpush1.bf16.xpose.msra.mxu0 0
        %918 = vmatprep.subr.bf16.mxu0 0
        %919 = vmatpush1.bf16.xpose.msra.mxu0 0
        %920 = vmatprep.subr.bf16.mxu0 0
        %921 = vmatpush1.bf16.xpose.msra.mxu0 0
        %922 = vmatprep.subr.bf16.mxu0 0
        %923 = vmatpush1.bf16.xpose.msra.mxu0 0
        %924 = vmatprep.subr.bf16.mxu0 0
        %925 = vmatpush1.bf16.xpose.msra.mxu0 0
        %926 = vmatprep.subr.bf16.mxu0 0
        %927 = vmatpush1.bf16.xpose.msra.mxu0 0
        %928 = vmatprep.subr.bf16.mxu0 0
        %929 = vmatpush1.bf16.xpose.msra.mxu0 0
        %930 = vmatprep.subr.bf16.mxu0 0
        %931 = vmatpush1.bf16.xpose.msra.mxu0 0
        %932 = vmatprep.subr.bf16.mxu0 0
        %933 = vmatpush1.bf16.xpose.msra.mxu0 0
        %934 = vmatprep.mubr.bf16.mxu0 0
        %935 = vmatmul.mubr.bf16.gmra.mrb[0].mxu0 %v897
        %v936 = vpop.f32.mrb[0].mxu0
        %v937 = vadd.f32 %v895, %v936
        %v938 = vpop.f32.mrb[0].mxu0
        %v939 = vpop.f32.mrb[0].mxu0
        %v940 = vpop.f32.mrb[0].mxu0
        %941 = vdwg.mxu0
        %v942 = vadd.f32 %v937, %v524
        %s943 = scalar_lea.vmem [#allocation2], 24
        %v944 = vld [vmem:[%s943] sm:$0xff]
        %v945 = vsel %vm473, %v942, -inf
        %946 = vmax.xlane.f32.xlu0 %v945
        %v947 = vpop.xlane.xlu0 %946
        %v948 = vmax.f32 %v944, %v947
        %v949 = vsub.f32 %v944, %v948
        %v950 = vmul.f32 %v949, 1.442695
        %v951 = vpow.pop %v950
        %953 = vset.pattern.permute.xlu0 0
        %954 = vperm.xlu0 %953, %v948
        %v955 = vpop.permute.xlu0 %954
        %v957 = vsub.f32 %v942, %v955
        %v958 = vmul.f32 %v957, 1.442695
        %v959 = vpow.pop %v958
        %s960 = scalar_lea.vmem [#allocation3], 24
        %v961 = vld [vmem:[%s960] sm:$0xff]
        %v962 = vmul.f32 %v951, %v961
        %v963 = vsel %vm473, %v959, 0.0
        %964 = vadd.xlane.f32.xlu0 %v963
        %v965 = vpop.xlane.xlu0 %964
        %v966 = vadd.f32 %v962, %v965
        %967 = vst.msk [vmem:[%s960] sm:$0xff] %vm549, %v966
        %v968 = vpack.c.bf16 %v959, %v959
        %v970 = vsel %vm473, %v968, 0
        %v973 = vsel %vm555, %v892, 0
        %975 = vmatprep.subr.bf16.mxu0 0
        %976 = vmatpush1.bf16.msra.mxu0 %v973
        %977 = vmatprep.subr.bf16.mxu0 0
        %978 = vmatpush1.bf16.msra.mxu0 0
        %979 = vmatprep.subr.bf16.mxu0 0
        %980 = vmatpush1.bf16.msra.mxu0 0
        %981 = vmatprep.subr.bf16.mxu0 0
        %982 = vmatpush1.bf16.msra.mxu0 0
        %983 = vmatprep.subr.bf16.mxu0 0
        %984 = vmatpush1.bf16.msra.mxu0 0
        %985 = vmatprep.subr.bf16.mxu0 0
        %986 = vmatpush1.bf16.msra.mxu0 0
        %987 = vmatprep.subr.bf16.mxu0 0
        %988 = vmatpush1.bf16.msra.mxu0 0
        %989 = vmatprep.subr.bf16.mxu0 0
        %990 = vmatpush1.bf16.msra.mxu0 0
        %991 = vmatprep.subr.bf16.mxu0 0
        %992 = vmatpush1.bf16.msra.mxu0 0
        %993 = vmatprep.subr.bf16.mxu0 0
        %994 = vmatpush1.bf16.msra.mxu0 0
        %995 = vmatprep.subr.bf16.mxu0 0
        %996 = vmatpush1.bf16.msra.mxu0 0
        %997 = vmatprep.subr.bf16.mxu0 0
        %998 = vmatpush1.bf16.msra.mxu0 0
        %999 = vmatprep.subr.bf16.mxu0 0
        %1000 = vmatpush1.bf16.msra.mxu0 0
        %1001 = vmatprep.subr.bf16.mxu0 0
        %1002 = vmatpush1.bf16.msra.mxu0 0
        %1003 = vmatprep.subr.bf16.mxu0 0
        %1004 = vmatpush1.bf16.msra.mxu0 0
        %1005 = vmatprep.subr.bf16.mxu0 0
        %1006 = vmatpush1.bf16.msra.mxu0 0
        %1007 = vmatprep.mubr.bf16.mxu0 0
        %1008 = vmatmul.mubr.bf16.gmra.mrb[0].mxu0 %v970
        %v1009 = vpop.f32.mrb[0].mxu0
        %v1010 = vadd.f32 0.0, %v1009
        %v1011 = vpop.f32.mrb[0].mxu0
        %v1012 = vpop.f32.mrb[0].mxu0
        %v1013 = vpop.f32.mrb[0].mxu0
        %1014 = vdwg.mxu0
        %s1015 = scalar_lea.vmem [#allocation4], 24
        %v1016 = vld [vmem:[%s1015] sm:$0xff]
        %1018 = vset.pattern.permute.xlu0 0
        %1019 = vperm.xlu0 %1018, %v951
        %v1020 = vpop.permute.xlu0 %1019
        %v1022 = vmul.f32 %v1020, %v1016
        %v1023 = vadd.f32 %v1022, %v1010
        %1024 = vst.msk [vmem:[%s1015] sm:$0xff] %vm473, %v1023
        %1025 = vst.msk [vmem:[%s943] sm:$0xff] %vm549, %v948
        // Predicated region
        $region65: #{tpu_custom_call.1} parent=43 // pred_check
          %p1026 = pneg %p449
        $region66: #{tpu_custom_call.1} parent=43 // pred_check_branch
          %1028 = sbr.rel (%p1026) target = $region68
        $region67: #{tpu_custom_call.1} parent=43 // pred_region
          %v1029 = vld [vmem:[#allocation3] sm:$0xff]
          %v1030 = vrcp.pop %v1029
          %v1031 = vld [vmem:[#allocation4] sm:$0xff]
          %1033 = vset.pattern.permute.xlu0 0
          %1034 = vperm.xlu0 %1033, %v1030
          %v1035 = vpop.permute.xlu0 %1034
          %v1037 = vmul.f32 %v1031, %v1035
          %v1038 = vpack.c.bf16 %v1037, %v1037
          %vm1039 = vcmask 60416
          %1040 = vst.msk [vmem:[#allocation5] sm:$0xf] %vm1039, %v1038
          %v1041 = vld [vmem:[%s682] sm:$0xff]
          %v1042 = vrcp.pop %v1041
          %v1043 = vld [vmem:[%s737] sm:$0xff]
          %1045 = vset.pattern.permute.xlu0 0
          %1046 = vperm.xlu0 %1045, %v1042
          %v1047 = vpop.permute.xlu0 %1046
          %v1049 = vmul.f32 %v1043, %v1047
          %v1050 = vpack.c.bf16 %v1049, %v1049
          %v1052 = vunpack.c.l.b16 %v1050
          %v1053 = vpack.c.b16 %v1052, %v1052
          %1054 = vrot.lane.b32.xlu0 %v1053, 8
          %v1055 = vpop.permute.xlu0 %1054
          %vm1057 = vcmask 126016
          %1058 = vst.msk [vmem:[#allocation5] sm:$0xf] %vm1057, %v1055
          %v1059 = vld [vmem:[%s821] sm:$0xff]
          %v1060 = vrcp.pop %v1059
          %v1061 = vld [vmem:[%s876] sm:$0xff]
          %1063 = vset.pattern.permute.xlu0 0
          %1064 = vperm.xlu0 %1063, %v1060
          %v1065 = vpop.permute.xlu0 %1064
          %v1067 = vmul.f32 %v1061, %v1065
          %v1068 = vpack.c.bf16 %v1067, %v1067
          %v1070 = vunpack.c.l.b16 %v1068
          %v1071 = vpack.c.b16 %v1070, %v1070
          %1072 = vrot.lane.b32.xlu0 %v1071, 16
          %v1073 = vpop.permute.xlu0 %1072
          %vm1075 = vcmask 191616
          %1076 = vst.msk [vmem:[#allocation5] sm:$0xf] %vm1075, %v1073
          %v1077 = vld [vmem:[%s960] sm:$0xff]
          %v1078 = vrcp.pop %v1077
          %v1079 = vld [vmem:[%s1015] sm:$0xff]
          %1081 = vset.pattern.permute.xlu0 0
          %1082 = vperm.xlu0 %1081, %v1078
          %v1083 = vpop.permute.xlu0 %1082
          %v1085 = vmul.f32 %v1079, %v1083
          %v1086 = vpack.c.bf16 %v1085, %v1085
          %v1088 = vunpack.c.l.b16 %v1086
          %v1089 = vpack.c.b16 %v1088, %v1088
          %1090 = vrot.lane.b32.xlu0 %v1089, 24
          %v1091 = vpop.permute.xlu0 %1090
          %vm1093 = vcmask 257216
          %1094 = vst.msk [vmem:[#allocation5] sm:$0xf] %vm1093, %v1091
          %v1095 = vld [vmem:[#allocation5] sm:$0xf]
          %v1096 = vld [vmem:[%s5] sm:$0xf]
          %v1097 = vld [vmem:[%s5 + $0x4] sm:$0xf]
          %v1098 = vld [vmem:[%s5 + $0x8] sm:$0xf]
          %v1099 = vld [vmem:[%s5 + $0xc] sm:$0xf]
          %v1104 = vunpack.c.l.b16 %v1096
          %v1105 = vunpack.c.l.b16 %v1097
          %v1106 = vunpack.c.l.b16 %v1098
          %v1107 = vunpack.c.l.b16 %v1099
          %v1108 = vpack.c.b16 %v1105, %v1104
          %v1109 = vpack.c.b16 %v1107, %v1106
          %vm1112 = vcmask 261120
          %v1114 = vsel %vm1112, %v1095, 0
          %1116 = vmatprep.subr.bf16.mxu0 0
          %1117 = vmatpush1.bf16.msra.mxu0 %v1108
          %1118 = vmatprep.subr.bf16.mxu0 0
          %1119 = vmatpush1.bf16.msra.mxu0 %v1109
          %1120 = vmatprep.subr.bf16.mxu0 0
          %1121 = vmatpush1.bf16.msra.mxu0 0
          %1122 = vmatprep.subr.bf16.mxu0 0
          %1123 = vmatpush1.bf16.msra.mxu0 0
          %1124 = vmatprep.subr.bf16.mxu0 0
          %1125 = vmatpush1.bf16.msra.mxu0 0
          %1126 = vmatprep.subr.bf16.mxu0 0
          %1127 = vmatpush1.bf16.msra.mxu0 0
          %1128 = vmatprep.subr.bf16.mxu0 0
          %1129 = vmatpush1.bf16.msra.mxu0 0
          %1130 = vmatprep.subr.bf16.mxu0 0
          %1131 = vmatpush1.bf16.msra.mxu0 0
          %1132 = vmatprep.subr.bf16.mxu0 0
          %1133 = vmatpush1.bf16.msra.mxu0 0
          %1134 = vmatprep.subr.bf16.mxu0 0
          %1135 = vmatpush1.bf16.msra.mxu0 0
          %1136 = vmatprep.subr.bf16.mxu0 0
          %1137 = vmatpush1.bf16.msra.mxu0 0
          %1138 = vmatprep.subr.bf16.mxu0 0
          %1139 = vmatpush1.bf16.msra.mxu0 0
          %1140 = vmatprep.subr.bf16.mxu0 0
          %1141 = vmatpush1.bf16.msra.mxu0 0
          %1142 = vmatprep.subr.bf16.mxu0 0
          %1143 = vmatpush1.bf16.msra.mxu0 0
          %1144 = vmatprep.subr.bf16.mxu0 0
          %1145 = vmatpush1.bf16.msra.mxu0 0
          %1146 = vmatprep.subr.bf16.mxu0 0
          %1147 = vmatpush1.bf16.msra.mxu0 0
          %1148 = vmatprep.mubr.bf16.mxu0 0
          %1149 = vmatmul.mubr.bf16.gmra.mrb[0].mxu0 %v1114
          %v1150 = vpop.f32.mrb[0].mxu0
          %v1151 = vadd.f32 0.0, %v1150
          %v1152 = vpop.f32.mrb[0].mxu0
          %v1153 = vpop.f32.mrb[0].mxu0
          %v1154 = vpop.f32.mrb[0].mxu0
          %1155 = vdwg.mxu0
          %1156 = vst.msk [vmem:[%s441] sm:$0xff] %vm1112, %v1151
        $region68: #{tpu_custom_call.1} parent=43 // pred_fallthru
          _
        %s1157 = sand.u32 %s221, 1
        %s1158 = scalar_lea.sflag [#allocation8], %s1157
        %s1159 = sand.u32 %s221, 1
        %s1160 = smul.addr %s1159, 8
        %s1161 = scalar_lea.vmem [#allocation14], %s1160
        // Predicated region
        $region69: #{tpu_custom_call.1} parent=43 // pred_check
          %p1162 = pneg %p231
        $region70: #{tpu_custom_call.1} parent=43 // pred_check_branch
          %1164 = sbr.rel (%p1162) target = $region72
        $region71: #{tpu_custom_call.1} parent=43 // pred_region
          %s1166 = ssub.s32 128, 128
          %1167 = vsyncadd %s1158, %s1166
          %s1168 = sadd.s32 %s35, %s34
          %s1169 = smul.addr %s1168, 128
          %s1170 = scalar_lea.hbm %s6, %s1169
          %s1172 = sshll.u32 %s1161, 4
          %s1173 = int_to_ptr.vmem [resolvable:$true] %s1172
          %1175 = dma.vmem_to_hbm [thread:$0]  %s1173, 128, %s1170, %s1158
        $region72: #{tpu_custom_call.1} parent=43 // pred_fallthru
          _
      $region44: #{tpu_custom_call.1} parent=5 // pred_fallthru
        _
      %p1176 = scmp.le.s32.totalorder 2, %s24
      // Predicated region
      $region73: #{tpu_custom_call.1} parent=5 // pred_check
        %p1177 = pneg %p1176
      $region74: #{tpu_custom_call.1} parent=5 // pred_check_branch
        %1179 = sbr.rel (%p1177) target = $region76
      $region75: #{tpu_custom_call.1} parent=5 // pred_region
        %s1180 = ssub.s32 %s24, 2
        // Predicated region
        $region77: #{tpu_custom_call.1} parent=75 // pred_check
          %p1181 = pneg %p237
        $region78: #{tpu_custom_call.1} parent=75 // pred_check_branch
          %1183 = sbr.rel (%p1181) target = $region80
        $region79: #{tpu_custom_call.1} parent=75 // pred_region
          %s1184 = sand.u32 %s222, 1
          %s1185 = scalar_lea.sflag [#allocation8], %s1184
          %s1186 = sand.u32 %s222, 1
          %s1187 = smul.addr %s1186, 8
          %s1188 = scalar_lea.vmem [#allocation14], %s1187
          %1189 = dma.done %s1185, 128
        $region80: #{tpu_custom_call.1} parent=75 // pred_fallthru
          _
      $region76: #{tpu_custom_call.1} parent=5 // pred_fallthru
        _
    $region6: #{tpu_custom_call.1} parent=1 // loop_footer
      %s28 = sadd.s32 1, %s24
    $region7: #{tpu_custom_call.1} parent=1 // loop_footer_branch
      %23 = sbr.rel target = $region3
    $region8: #{tpu_custom_call.1} parent=1 // loop_exit
      _
    %1190 = vsyncpa [#allocation7], 1
    %s1191 = scalar_lea.sflag [#allocation7], 1
    %1192 = vsyncpa %s1191, 1
    %1193 = vsyncpa [#allocation10], 1
    %s1194 = scalar_lea.sflag [#allocation10], 1
    %1195 = vsyncpa %s1194, 1
    %1196 = vsyncpa [#allocation13], 1
    %s1197 = scalar_lea.sflag [#allocation13], 1
    %1198 = vsyncpa %s1197, 1
    %1199 = vsyncpa [#allocation8], 1
    %s1200 = scalar_lea.sflag [#allocation8], 1
    %1201 = vsyncpa %s1200, 1

</llo_original>
